<compile_context>
chip_gen: v6e
topology: v6e:2x2x1
jax: 0.10.0
libtpu: 0.0.40
codegen_flags: <defaults>
</compile_context>

<pallas_src>
import math

import jax
import jax.numpy as jnp
from jax.experimental import pallas as pl
from jax.experimental.pallas import tpu as pltpu

STATE_SIZE = 128
COMM_SIZE = 32
KEY_SIZE = 16
NUM_HOPS = 3
QKV_SIZE = 2 * KEY_SIZE + COMM_SIZE   # fused projection width = 64


def _comm_attention_kernel(states_ref,
                           w_msg_state_ref, w_msg_comm_ref, b_msg_ref,
                           w_qkv_ref, b_qkv_ref,
                           attn_out_ref, comm_out_ref):
    """One grid step = one process: NUM_HOPS hops of attention over its A agents."""
    x = states_ref[0]                                   # (A, state_size) f32
    a_rows = x.shape[0]

    # Loop-invariant loads / broadcasts, hoisted out of the unrolled hop loop.
    w_ms = w_msg_state_ref[...]                         # (state_size, state_size)
    w_mc = w_msg_comm_ref[...]                          # (comm_size,  state_size)
    w_qkv = w_qkv_ref[...]                              # (state_size, 2*key+comm)
    b_msg = jnp.broadcast_to(b_msg_ref[...], (a_rows, STATE_SIZE))
    b_qkv = jnp.broadcast_to(b_qkv_ref[...], (a_rows, QKV_SIZE))
    inv_sqrt = jnp.float32(1.0 / math.sqrt(COMM_SIZE))

    comm = None
    for hop in range(NUM_HOPS):                         # static unroll
        if hop > 0:
            # msg2nextstate with the concat folded into two lane-aligned matmuls:
            # tanh(concat([comm, x]) @ W_msg + b) == tanh(comm @ Wc + x @ Ws + b)
            x = jnp.tanh(
                jnp.dot(x, w_ms, preferred_element_type=jnp.float32)
                + jnp.dot(comm, w_mc, preferred_element_type=jnp.float32)
                + b_msg)

        # Fused Q/K/V projection: one MXU push instead of three lane-sparse ones.
        qkv = jnp.dot(x, w_qkv, preferred_element_type=jnp.float32) + b_qkv
        q = qkv[:, :KEY_SIZE]
        k = qkv[:, KEY_SIZE:2 * KEY_SIZE]
        v = qkv[:, 2 * KEY_SIZE:]

        # Scores over this process's agents only (block-diagonal structure ->
        # no mask needed); contract the shared last dim, no explicit k.T.
        scores = jax.lax.dot_general(
            q, k, (((1,), (1,)), ((), ())),
            preferred_element_type=jnp.float32) * inv_sqrt          # (A, A)

        m = jnp.max(scores, axis=-1, keepdims=True)
        e = jnp.exp(scores - m)
        inv_l = pl.reciprocal(jnp.sum(e, axis=-1, keepdims=True), approx=False)
        attn = e * inv_l                                            # (A, A)

        comm = jnp.dot(attn, v, preferred_element_type=jnp.float32)  # (A, comm)
        attn_out_ref[hop, 0] = attn

    comm_out_ref[0] = comm


def init_params(key):
    """Deterministic nn.Linear-style init (uniform +-1/sqrt(fan_in))."""
    def linear(k, fan_in, fan_out):
        k1, k2 = jax.random.split(k)
        bound = 1.0 / math.sqrt(fan_in)
        w = jax.random.uniform(k1, (fan_in, fan_out), jnp.float32, -bound, bound)
        b = jax.random.uniform(k2, (1, fan_out), jnp.float32, -bound, bound)
        return w, b

    keys = jax.random.split(key, 4)
    w_msg, b_msg = linear(keys[0], STATE_SIZE + COMM_SIZE, STATE_SIZE)
    w_q, b_q = linear(keys[1], STATE_SIZE, KEY_SIZE)
    w_k, b_k = linear(keys[2], STATE_SIZE, KEY_SIZE)
    w_v, b_v = linear(keys[3], STATE_SIZE, COMM_SIZE)
    return dict(w_msg=w_msg, b_msg=b_msg, w_q=w_q, b_q=b_q,
                w_k=w_k, b_k=b_k, w_v=w_v, b_v=b_v)


def comm_attention_forward(states, params):
    """states: (num_processes, num_agents, state_size) -> (p_attn list, comm)."""
    P, A, S = states.shape
    assert S == STATE_SIZE
    N = P * A
    x = states.astype(jnp.float32)

    # Pack weights once in the wrapper (layout-only change; same math):
    #   fused QKV projection, msg2nextstate split into comm / state parts.
    w_qkv = jnp.concatenate([params["w_q"], params["w_k"], params["w_v"]], axis=1)
    b_qkv = jnp.concatenate([params["b_q"], params["b_k"], params["b_v"]], axis=1)
    w_msg_comm = params["w_msg"][:COMM_SIZE]      # (comm_size,  state_size)
    w_msg_state = params["w_msg"][COMM_SIZE:]     # (state_size, state_size)
    b_msg = params["b_msg"]

    def resident(shape):
        # Whole array, same block every grid step -> stays resident in VMEM.
        return pl.BlockSpec(shape, lambda p: (0,) * len(shape))

    attn_blocks, comm = pl.pallas_call(
        _comm_attention_kernel,
        out_shape=(jax.ShapeDtypeStruct((NUM_HOPS, P, A, A), jnp.float32),
                   jax.ShapeDtypeStruct((P, A, COMM_SIZE), jnp.float32)),
        grid=(P,),
        in_specs=[
            pl.BlockSpec((1, A, S), lambda p: (p, 0, 0)),   # this process's agents
            resident(w_msg_state.shape),
            resident(w_msg_comm.shape),
            resident(b_msg.shape),
            resident(w_qkv.shape),
            resident(b_qkv.shape),
        ],
        out_specs=(
            pl.BlockSpec((NUM_HOPS, 1, A, A), lambda p: (0, p, 0, 0)),
            pl.BlockSpec((1, A, COMM_SIZE), lambda p: (p, 0, 0)),
        ),
        compiler_params=pltpu.CompilerParams(
            dimension_semantics=("parallel",),
            vmem_limit_bytes=32 * 1024 * 1024),
    )(x, w_msg_state, w_msg_comm, b_msg, w_qkv, b_qkv)

    # Reconstruct the full (N, N) attention maps expected by the module: the
    # kernel emits only the block-diagonal (per-process) blocks; every other
    # entry of the reference masked softmax is exactly 0.
    eye = jnp.eye(P, dtype=attn_blocks.dtype)
    attn_full = jnp.einsum('pq,hpab->hpaqb', eye, attn_blocks).reshape(NUM_HOPS, N, N)
    p_attn = [attn_full[i] for i in range(NUM_HOPS)]
    return p_attn, comm


def _reference_forward(states, params):
    """Pure-JAX reference mirroring the PyTorch module, for correctness check."""
    P, A, S = states.shape
    N = P * A
    x = states.reshape(N, S).astype(jnp.float32)
    grp = jnp.arange(N) // A
    mask = (grp[:, None] == grp[None, :])
    p_attn = []
    comm = None
    for hop in range(NUM_HOPS):
        if hop > 0:
            x = jnp.tanh(jnp.concatenate([comm, x], axis=1) @ params["w_msg"]
                         + params["b_msg"])
        q = x @ params["w_q"] + params["b_q"]
        k = x @ params["w_k"] + params["b_k"]
        v = x @ params["w_v"] + params["b_v"]
        scores = (q @ k.T) / math.sqrt(COMM_SIZE)
        scores = jnp.where(mask, scores, -1e9)
        attn = jax.nn.softmax(scores, axis=-1)
        comm = attn @ v
        p_attn.append(attn)
    return p_attn, comm.reshape(P, A, COMM_SIZE)


if __name__ == "__main__":
    key = jax.random.PRNGKey(0)
    k_states, k_params = jax.random.split(key)

    num_processes, num_agents = 2, 4
    states = jax.random.normal(
        k_states, (num_processes, num_agents, STATE_SIZE), jnp.float32)
    params = init_params(k_params)

    p_attn, comm = comm_attention_forward(states, params)
    comm = jax.block_until_ready(comm)
    p_attn = [jax.block_until_ready(a) for a in p_attn]

    # sanity check against pure-JAX reference
    p_attn_ref, comm_ref = _reference_forward(states, params)
    assert comm.shape == (num_processes, num_agents, COMM_SIZE)
    assert len(p_attn) == NUM_HOPS
    for a, a_ref in zip(p_attn, p_attn_ref):
        assert a.shape == (num_processes * num_agents, num_processes * num_agents)
        assert jnp.allclose(a, a_ref, atol=1e-4, rtol=1e-4)
    assert jnp.allclose(comm, comm_ref, atol=1e-4, rtol=1e-4)

    print("KERNEL_OK")
</pallas_src>

<mosaic_0001>
module attributes {stable_mosaic.version = 11 : i64} {
  func.func @_comm_attention_kernel(%arg0: i32, %arg1: memref<1x4x128xf32, #tpu.memory_space<vmem>>, %arg2: memref<128x128xf32, #tpu.memory_space<vmem>>, %arg3: memref<32x128xf32, #tpu.memory_space<vmem>>, %arg4: memref<1x128xf32, #tpu.memory_space<vmem>>, %arg5: memref<128x64xf32, #tpu.memory_space<vmem>>, %arg6: memref<1x64xf32, #tpu.memory_space<vmem>>, %arg7: memref<3x1x4x4xf32, #tpu.memory_space<vmem>>, %arg8: memref<1x4x32xf32, #tpu.memory_space<vmem>>) attributes {dimension_semantics = [#tpu.dimension_semantics<parallel>], iteration_bounds = array<i64: 2>, scalar_prefetch = 0 : i64, scratch_operands = 0 : i64, tpu.core_type = #tpu.core_type<tc>, window_params = [{transform_indices = @transform_0, window_bounds = array<i64: 1, 4, 128>}, {pipeline_mode = #tpu.pipeline_mode<synchronous>, transform_indices = @transform_1, window_bounds = array<i64: 128, 128>}, {pipeline_mode = #tpu.pipeline_mode<synchronous>, transform_indices = @transform_2, window_bounds = array<i64: 32, 128>}, {pipeline_mode = #tpu.pipeline_mode<synchronous>, transform_indices = @transform_3, window_bounds = array<i64: 1, 128>}, {pipeline_mode = #tpu.pipeline_mode<synchronous>, transform_indices = @transform_4, window_bounds = array<i64: 128, 64>}, {pipeline_mode = #tpu.pipeline_mode<synchronous>, transform_indices = @transform_5, window_bounds = array<i64: 1, 64>}, {transform_indices = @transform_6, window_bounds = array<i64: 3, 1, 4, 4>}, {transform_indices = @transform_7, window_bounds = array<i64: 1, 4, 32>}]} {
    %c0 = arith.constant 0 : index
    %c0_0 = arith.constant 0 : index
    %c0_1 = arith.constant 0 : index
    %0 = vector.load %arg1[%c0, %c0_0, %c0_1] : memref<1x4x128xf32, #tpu.memory_space<vmem>>, vector<1x4x128xf32>
    %1 = vector.shape_cast %0 : vector<1x4x128xf32> to vector<4x128xf32>
    %c0_2 = arith.constant 0 : index
    %c0_3 = arith.constant 0 : index
    %2 = vector.load %arg2[%c0_2, %c0_3] : memref<128x128xf32, #tpu.memory_space<vmem>>, vector<128x128xf32>
    %c0_4 = arith.constant 0 : index
    %c0_5 = arith.constant 0 : index
    %3 = vector.load %arg3[%c0_4, %c0_5] : memref<32x128xf32, #tpu.memory_space<vmem>>, vector<32x128xf32>
    %c0_6 = arith.constant 0 : index
    %c0_7 = arith.constant 0 : index
    %4 = vector.load %arg5[%c0_6, %c0_7] : memref<128x64xf32, #tpu.memory_space<vmem>>, vector<128x64xf32>
    %c0_8 = arith.constant 0 : index
    %c0_9 = arith.constant 0 : index
    %5 = vector.load %arg4[%c0_8, %c0_9] : memref<1x128xf32, #tpu.memory_space<vmem>>, vector<1x128xf32>
    %6 = vector.shape_cast %5 : vector<1x128xf32> to vector<1x128xf32>
    %7 = vector.broadcast %6 : vector<1x128xf32> to vector<4x128xf32>
    %c0_10 = arith.constant 0 : index
    %c0_11 = arith.constant 0 : index
    %8 = vector.load %arg6[%c0_10, %c0_11] : memref<1x64xf32, #tpu.memory_space<vmem>>, vector<1x64xf32>
    %9 = vector.shape_cast %8 : vector<1x64xf32> to vector<1x64xf32>
    %10 = vector.broadcast %9 : vector<1x64xf32> to vector<4x64xf32>
    %cst = arith.constant dense<0.000000e+00> : vector<4x64xf32>
    %11 = tpu.matmul %1, %4, %cst {dimension_numbers = #tpu.dot_dimension_numbers<[1], [0], [0], [1], [0, 0, 1, 1], [], []>} : vector<4x128xf32>, vector<128x64xf32>, vector<4x64xf32> -> vector<4x64xf32>
    %12 = arith.addf %11, %10 : vector<4x64xf32>
    %13 = vector.extract_strided_slice %12 {offsets = [0, 0], sizes = [4, 16], strides = [1, 1]} : vector<4x64xf32> to vector<4x16xf32>
    %14 = vector.extract_strided_slice %12 {offsets = [0, 16], sizes = [4, 16], strides = [1, 1]} : vector<4x64xf32> to vector<4x16xf32>
    %15 = vector.extract_strided_slice %12 {offsets = [0, 32], sizes = [4, 32], strides = [1, 1]} : vector<4x64xf32> to vector<4x32xf32>
    %cst_12 = arith.constant dense<0.000000e+00> : vector<4x4xf32>
    %16 = tpu.matmul %13, %14, %cst_12 {dimension_numbers = #tpu.dot_dimension_numbers<[1], [1], [0], [0], [0, 0, 1, 0], [], []>} : vector<4x16xf32>, vector<4x16xf32>, vector<4x4xf32> -> vector<4x4xf32>
    %cst_13 = arith.constant 0.176776692 : f32
    %17 = vector.broadcast %cst_13 : f32 to vector<4x4xf32>
    %18 = arith.mulf %16, %17 : vector<4x4xf32>
    %cst_14 = arith.constant dense<0xFF800000> : vector<4xf32>
    %19 = vector.multi_reduction <maximumf>, %18, %cst_14 [1] : vector<4x4xf32> to vector<4xf32>
    %20 = vector.shape_cast %19 : vector<4xf32> to vector<4x1xf32>
    %21 = vector.broadcast %20 : vector<4x1xf32> to vector<4x4xf32>
    %22 = arith.subf %18, %21 : vector<4x4xf32>
    %23 = math.exp %22 : vector<4x4xf32>
    %cst_15 = arith.constant dense<0.000000e+00> : vector<4xf32>
    %24 = vector.multi_reduction <add>, %23, %cst_15 [1] : vector<4x4xf32> to vector<4xf32>
    %25 = vector.shape_cast %24 : vector<4xf32> to vector<4x1xf32>
    %26 = tpu.reciprocal %25 : vector<4x1xf32> -> vector<4x1xf32>
    %27 = vector.broadcast %26 : vector<4x1xf32> to vector<4x4xf32>
    %28 = arith.mulf %23, %27 : vector<4x4xf32>
    %cst_16 = arith.constant dense<0.000000e+00> : vector<4x32xf32>
    %29 = tpu.matmul %28, %15, %cst_16 {dimension_numbers = #tpu.dot_dimension_numbers<[1], [0], [0], [1], [0, 0, 1, 1], [], []>} : vector<4x4xf32>, vector<4x32xf32>, vector<4x32xf32> -> vector<4x32xf32>
    %c0_17 = arith.constant 0 : index
    %c0_18 = arith.constant 0 : index
    %c0_19 = arith.constant 0 : index
    %c0_20 = arith.constant 0 : index
    %30 = vector.load %arg7[%c0_17, %c0_18, %c0_19, %c0_20] : memref<3x1x4x4xf32, #tpu.memory_space<vmem>>, vector<1x1x4x4xf32>
    %31 = vector.shape_cast %30 : vector<1x1x4x4xf32> to vector<4x4xf32>
    %32 = vector.shape_cast %28 : vector<4x4xf32> to vector<1x1x4x4xf32>
    tpu.vector_store %arg7[%c0_17, %c0_18, %c0_19, %c0_20], %32 {strides = array<i32>} : memref<3x1x4x4xf32, #tpu.memory_space<vmem>>, vector<1x1x4x4xf32>,
    %cst_21 = arith.constant dense<0.000000e+00> : vector<4x128xf32>
    %33 = tpu.matmul %1, %2, %cst_21 {dimension_numbers = #tpu.dot_dimension_numbers<[1], [0], [0], [1], [0, 0, 1, 1], [], []>} : vector<4x128xf32>, vector<128x128xf32>, vector<4x128xf32> -> vector<4x128xf32>
    %cst_22 = arith.constant dense<0.000000e+00> : vector<4x128xf32>
    %34 = tpu.matmul %29, %3, %cst_22 {dimension_numbers = #tpu.dot_dimension_numbers<[1], [0], [0], [1], [0, 0, 1, 1], [], []>} : vector<4x32xf32>, vector<32x128xf32>, vector<4x128xf32> -> vector<4x128xf32>
    %35 = arith.addf %33, %34 : vector<4x128xf32>
    %36 = arith.addf %35, %7 : vector<4x128xf32>
    %37 = math.tanh %36 : vector<4x128xf32>
    %cst_23 = arith.constant dense<0.000000e+00> : vector<4x64xf32>
    %38 = tpu.matmul %37, %4, %cst_23 {dimension_numbers = #tpu.dot_dimension_numbers<[1], [0], [0], [1], [0, 0, 1, 1], [], []>} : vector<4x128xf32>, vector<128x64xf32>, vector<4x64xf32> -> vector<4x64xf32>
    %39 = arith.addf %38, %10 : vector<4x64xf32>
    %40 = vector.extract_strided_slice %39 {offsets = [0, 0], sizes = [4, 16], strides = [1, 1]} : vector<4x64xf32> to vector<4x16xf32>
    %41 = vector.extract_strided_slice %39 {offsets = [0, 16], sizes = [4, 16], strides = [1, 1]} : vector<4x64xf32> to vector<4x16xf32>
    %42 = vector.extract_strided_slice %39 {offsets = [0, 32], sizes = [4, 32], strides = [1, 1]} : vector<4x64xf32> to vector<4x32xf32>
    %cst_24 = arith.constant dense<0.000000e+00> : vector<4x4xf32>
    %43 = tpu.matmul %40, %41, %cst_24 {dimension_numbers = #tpu.dot_dimension_numbers<[1], [1], [0], [0], [0, 0, 1, 0], [], []>} : vector<4x16xf32>, vector<4x16xf32>, vector<4x4xf32> -> vector<4x4xf32>
    %cst_25 = arith.constant 0.176776692 : f32
    %44 = vector.broadcast %cst_25 : f32 to vector<4x4xf32>
    %45 = arith.mulf %43, %44 : vector<4x4xf32>
    %cst_26 = arith.constant dense<0xFF800000> : vector<4xf32>
    %46 = vector.multi_reduction <maximumf>, %45, %cst_26 [1] : vector<4x4xf32> to vector<4xf32>
    %47 = vector.shape_cast %46 : vector<4xf32> to vector<4x1xf32>
    %48 = vector.broadcast %47 : vector<4x1xf32> to vector<4x4xf32>
    %49 = arith.subf %45, %48 : vector<4x4xf32>
    %50 = math.exp %49 : vector<4x4xf32>
    %cst_27 = arith.constant dense<0.000000e+00> : vector<4xf32>
    %51 = vector.multi_reduction <add>, %50, %cst_27 [1] : vector<4x4xf32> to vector<4xf32>
    %52 = vector.shape_cast %51 : vector<4xf32> to vector<4x1xf32>
    %53 = tpu.reciprocal %52 : vector<4x1xf32> -> vector<4x1xf32>
    %54 = vector.broadcast %53 : vector<4x1xf32> to vector<4x4xf32>
    %55 = arith.mulf %50, %54 : vector<4x4xf32>
    %cst_28 = arith.constant dense<0.000000e+00> : vector<4x32xf32>
    %56 = tpu.matmul %55, %42, %cst_28 {dimension_numbers = #tpu.dot_dimension_numbers<[1], [0], [0], [1], [0, 0, 1, 1], [], []>} : vector<4x4xf32>, vector<4x32xf32>, vector<4x32xf32> -> vector<4x32xf32>
    %c1 = arith.constant 1 : index
    %c0_29 = arith.constant 0 : index
    %c0_30 = arith.constant 0 : index
    %c0_31 = arith.constant 0 : index
    %57 = vector.load %arg7[%c1, %c0_29, %c0_30, %c0_31] : memref<3x1x4x4xf32, #tpu.memory_space<vmem>>, vector<1x1x4x4xf32>
    %58 = vector.shape_cast %57 : vector<1x1x4x4xf32> to vector<4x4xf32>
    %59 = vector.shape_cast %55 : vector<4x4xf32> to vector<1x1x4x4xf32>
    tpu.vector_store %arg7[%c1, %c0_29, %c0_30, %c0_31], %59 {strides = array<i32>} : memref<3x1x4x4xf32, #tpu.memory_space<vmem>>, vector<1x1x4x4xf32>,
    %cst_32 = arith.constant dense<0.000000e+00> : vector<4x128xf32>
    %60 = tpu.matmul %37, %2, %cst_32 {dimension_numbers = #tpu.dot_dimension_numbers<[1], [0], [0], [1], [0, 0, 1, 1], [], []>} : vector<4x128xf32>, vector<128x128xf32>, vector<4x128xf32> -> vector<4x128xf32>
    %cst_33 = arith.constant dense<0.000000e+00> : vector<4x128xf32>
    %61 = tpu.matmul %56, %3, %cst_33 {dimension_numbers = #tpu.dot_dimension_numbers<[1], [0], [0], [1], [0, 0, 1, 1], [], []>} : vector<4x32xf32>, vector<32x128xf32>, vector<4x128xf32> -> vector<4x128xf32>
    %62 = arith.addf %60, %61 : vector<4x128xf32>
    %63 = arith.addf %62, %7 : vector<4x128xf32>
    %64 = math.tanh %63 : vector<4x128xf32>
    %cst_34 = arith.constant dense<0.000000e+00> : vector<4x64xf32>
    %65 = tpu.matmul %64, %4, %cst_34 {dimension_numbers = #tpu.dot_dimension_numbers<[1], [0], [0], [1], [0, 0, 1, 1], [], []>} : vector<4x128xf32>, vector<128x64xf32>, vector<4x64xf32> -> vector<4x64xf32>
    %66 = arith.addf %65, %10 : vector<4x64xf32>
    %67 = vector.extract_strided_slice %66 {offsets = [0, 0], sizes = [4, 16], strides = [1, 1]} : vector<4x64xf32> to vector<4x16xf32>
    %68 = vector.extract_strided_slice %66 {offsets = [0, 16], sizes = [4, 16], strides = [1, 1]} : vector<4x64xf32> to vector<4x16xf32>
    %69 = vector.extract_strided_slice %66 {offsets = [0, 32], sizes = [4, 32], strides = [1, 1]} : vector<4x64xf32> to vector<4x32xf32>
    %cst_35 = arith.constant dense<0.000000e+00> : vector<4x4xf32>
    %70 = tpu.matmul %67, %68, %cst_35 {dimension_numbers = #tpu.dot_dimension_numbers<[1], [1], [0], [0], [0, 0, 1, 0], [], []>} : vector<4x16xf32>, vector<4x16xf32>, vector<4x4xf32> -> vector<4x4xf32>
    %cst_36 = arith.constant 0.176776692 : f32
    %71 = vector.broadcast %cst_36 : f32 to vector<4x4xf32>
    %72 = arith.mulf %70, %71 : vector<4x4xf32>
    %cst_37 = arith.constant dense<0xFF800000> : vector<4xf32>
    %73 = vector.multi_reduction <maximumf>, %72, %cst_37 [1] : vector<4x4xf32> to vector<4xf32>
    %74 = vector.shape_cast %73 : vector<4xf32> to vector<4x1xf32>
    %75 = vector.broadcast %74 : vector<4x1xf32> to vector<4x4xf32>
    %76 = arith.subf %72, %75 : vector<4x4xf32>
    %77 = math.exp %76 : vector<4x4xf32>
    %cst_38 = arith.constant dense<0.000000e+00> : vector<4xf32>
    %78 = vector.multi_reduction <add>, %77, %cst_38 [1] : vector<4x4xf32> to vector<4xf32>
    %79 = vector.shape_cast %78 : vector<4xf32> to vector<4x1xf32>
    %80 = tpu.reciprocal %79 : vector<4x1xf32> -> vector<4x1xf32>
    %81 = vector.broadcast %80 : vector<4x1xf32> to vector<4x4xf32>
    %82 = arith.mulf %77, %81 : vector<4x4xf32>
    %cst_39 = arith.constant dense<0.000000e+00> : vector<4x32xf32>
    %83 = tpu.matmul %82, %69, %cst_39 {dimension_numbers = #tpu.dot_dimension_numbers<[1], [0], [0], [1], [0, 0, 1, 1], [], []>} : vector<4x4xf32>, vector<4x32xf32>, vector<4x32xf32> -> vector<4x32xf32>
    %c2 = arith.constant 2 : index
    %c0_40 = arith.constant 0 : index
    %c0_41 = arith.constant 0 : index
    %c0_42 = arith.constant 0 : index
    %84 = vector.load %arg7[%c2, %c0_40, %c0_41, %c0_42] : memref<3x1x4x4xf32, #tpu.memory_space<vmem>>, vector<1x1x4x4xf32>
    %85 = vector.shape_cast %84 : vector<1x1x4x4xf32> to vector<4x4xf32>
    %86 = vector.shape_cast %82 : vector<4x4xf32> to vector<1x1x4x4xf32>
    tpu.vector_store %arg7[%c2, %c0_40, %c0_41, %c0_42], %86 {strides = array<i32>} : memref<3x1x4x4xf32, #tpu.memory_space<vmem>>, vector<1x1x4x4xf32>,
    %c0_43 = arith.constant 0 : index
    %c0_44 = arith.constant 0 : index
    %c0_45 = arith.constant 0 : index
    %87 = vector.load %arg8[%c0_43, %c0_44, %c0_45] : memref<1x4x32xf32, #tpu.memory_space<vmem>>, vector<1x4x32xf32>
    %88 = vector.shape_cast %87 : vector<1x4x32xf32> to vector<4x32xf32>
    %89 = vector.shape_cast %83 : vector<4x32xf32> to vector<1x4x32xf32>
    tpu.vector_store %arg8[%c0_43, %c0_44, %c0_45], %89 {strides = array<i32>} : memref<1x4x32xf32, #tpu.memory_space<vmem>>, vector<1x4x32xf32>,
    return
  }
  func.func @transform_0(%arg0: i32) -> (i32, i32, i32) {
    %c0_i32 = arith.constant 0 : i32
    %c0_i32_0 = arith.constant 0 : i32
    %c0_i32_1 = arith.constant 0 : i32
    return %arg0, %c0_i32, %c0_i32_0 : i32, i32, i32
  }
  func.func @transform_1(%arg0: i32) -> (i32, i32) {
    %c0_i32 = arith.constant 0 : i32
    %c0_i32_0 = arith.constant 0 : i32
    %c0_i32_1 = arith.constant 0 : i32
    return %c0_i32, %c0_i32_0 : i32, i32
  }
  func.func @transform_2(%arg0: i32) -> (i32, i32) {
    %c0_i32 = arith.constant 0 : i32
    %c0_i32_0 = arith.constant 0 : i32
    %c0_i32_1 = arith.constant 0 : i32
    return %c0_i32, %c0_i32_0 : i32, i32
  }
  func.func @transform_3(%arg0: i32) -> (i32, i32) {
    %c0_i32 = arith.constant 0 : i32
    %c0_i32_0 = arith.constant 0 : i32
    %c0_i32_1 = arith.constant 0 : i32
    return %c0_i32, %c0_i32_0 : i32, i32
  }
  func.func @transform_4(%arg0: i32) -> (i32, i32) {
    %c0_i32 = arith.constant 0 : i32
    %c0_i32_0 = arith.constant 0 : i32
    %c0_i32_1 = arith.constant 0 : i32
    return %c0_i32, %c0_i32_0 : i32, i32
  }
  func.func @transform_5(%arg0: i32) -> (i32, i32) {
    %c0_i32 = arith.constant 0 : i32
    %c0_i32_0 = arith.constant 0 : i32
    %c0_i32_1 = arith.constant 0 : i32
    return %c0_i32, %c0_i32_0 : i32, i32
  }
  func.func @transform_6(%arg0: i32) -> (i32, i32, i32, i32) {
    %c0_i32 = arith.constant 0 : i32
    %c0_i32_0 = arith.constant 0 : i32
    %c0_i32_1 = arith.constant 0 : i32
    %c0_i32_2 = arith.constant 0 : i32
    return %c0_i32, %arg0, %c0_i32_0, %c0_i32_1 : i32, i32, i32, i32
  }
  func.func @transform_7(%arg0: i32) -> (i32, i32, i32) {
    %c0_i32 = arith.constant 0 : i32
    %c0_i32_0 = arith.constant 0 : i32
    %c0_i32_1 = arith.constant 0 : i32
    return %arg0, %c0_i32, %c0_i32_0 : i32, i32, i32
  }
}

</mosaic_0001>

<llo_original>
// kernel: tpu_custom_call.1
$region0: #{tpu_custom_call.1}
  #allocation0 [shape = 'u32[]', space=smem, size = 0x4, offset = 0x4, fixed_abs, tag = 'smem constant byte address 0x4 - core index']
  #allocation1 [shape = 'u32[144,128]{1,0:T(1,128)}', space=vmem, size = 0x12000, scoped, tag = 'internal scratch']
  %s0 = inlined_call_operand.vmem [shape: f32[2,4,128], index: 0, kind: input, shape index: {}]
  %s1 = inlined_call_operand.vmem [shape: f32[128,128], index: 1, kind: input, shape index: {}]
  %s2 = inlined_call_operand.vmem [shape: f32[32,128], index: 2, kind: input, shape index: {}]
  %s3 = inlined_call_operand.vmem [shape: f32[1,128], index: 3, kind: input, shape index: {}]
  %s4 = inlined_call_operand.vmem [shape: f32[128,64], index: 4, kind: input, shape index: {}]
  %s5 = inlined_call_operand.vmem [shape: f32[1,64], index: 5, kind: input, shape index: {}]
  %s6 = inlined_call_operand.hbm [shape: f32[3,2,4,4], index: 6, kind: output, shape index: {0}]
  %s7 = inlined_call_operand.hbm [shape: f32[2,4,32], index: 7, kind: output, shape index: {1}]
  %8 = xla_tuple %s6, %s7
  %s9 = sld [smem:[#allocation0]]
  $region65: #{tpu_custom_call.1} parent=0
    _
  %s11 = ssub.s32 1, %s9
  %s12 = scalar_select 0, %s11, %s9
  $region1: #{tpu_custom_call.1} parent=0
    #allocation2 [shape = 'u8[12288]{0}', space=vmem, size = 0x3000, scoped, tag = 'output window, operand 0']
    #allocation3 [shape = 's32[2]{0}', space=sflag, size = 0x8, scoped, tag = 'scoped memory for tpu_custom_call.1']
    #allocation4 [shape = 'u8[4096]{0}', space=vmem, size = 0x1000, scoped, tag = 'output window, operand 1']
    #allocation5 [shape = 's32[2]{0}', space=sflag, size = 0x8, scoped, tag = 'scoped memory for tpu_custom_call.1']
    %13 = vsyncpa [#allocation3], 0
    %s14 = scalar_lea.sflag [#allocation3], 1
    %15 = vsyncpa %s14, 0
    %16 = vsyncpa [#allocation5], 0
    %s17 = scalar_lea.sflag [#allocation5], 1
    %18 = vsyncpa %s17, 0
    loop: start=0, step=1, limit=4
    $region2: #{tpu_custom_call.1} parent=1 // loop_pre_header
      _
    $region3: #{tpu_custom_call.1} parent=1 // loop_header
      %s20 = sphi 0, %s24
      %p21 = scmp.ge.s32.totalorder %s20, 4
      %s30 = sphi 0, %s32
      %s33 = sphi 0, %s30
      %s34 = sphi 0, %s33
      %s50 = sphi 0, %s34
      %s54 = sphi 0, %s54
      %s56 = sphi 0, %s54
      %s57 = sphi 0, %s56
      %s71 = sphi 0, %s57
      %s75 = sphi 0, %s75
      %s77 = sphi 0, %s75
      %s78 = sphi 0, %s77
      %s92 = sphi 0, %s78
      %s96 = sphi 0, %s96
      %s98 = sphi 0, %s96
      %s99 = sphi 0, %s98
      %s113 = sphi 0, %s99
      %s117 = sphi 0, %s117
      %s119 = sphi 0, %s117
      %s120 = sphi 0, %s119
      %s134 = sphi 0, %s120
      %s138 = sphi 0, %s138
      %s140 = sphi 0, %s138
      %s141 = sphi 0, %s140
      %s155 = sphi 0, %s141
      %s161 = sphi 0, %s163
      %s164 = sphi 0, %s161
      %s165 = sphi 0, %s164
      %s181 = sphi 0, %s165
      %s187 = sphi 0, %s189
      %s190 = sphi 0, %s187
      %s191 = sphi 0, %s190
      %s207 = sphi 0, %s191
    $region4: #{tpu_custom_call.1} parent=1 // loop_header_branch
      %23 = sbr.rel (%p21) target = $region8
    $region5: #{tpu_custom_call.1} parent=1 // loop_body
      %s25 = ssub.s32 %s20, 1
      %s26 = ssub.s32 %s20, 2
      %s27 = sadd.s32 %s20, 1
      %s28 = ssub.s32 %s20, %s27
      %p29 = scmp.eq.s32.totalorder %s28, 0
      %s31 = sadd.s32 %s30, 1
      %s32 = scalar_select %p29, %s30, %s31
      %p35 = pneg %p29
      %p36 = scmp.eq.s32.totalorder %s20, 1
      %p37 = por %p35, %p36
      %p38 = scmp.ne.s32.totalorder %s30, %s33
      %p39 = scmp.eq.s32.totalorder %s20, 0
      %p40 = por %p38, %p39
      %p41 = scmp.ne.s32.totalorder %s30, %s33
      %p42 = scmp.eq.s32.totalorder %s25, 1
      %p43 = por %p41, %p42
      %p44 = scmp.ne.s32.totalorder %s33, %s34
      %p45 = scmp.eq.s32.totalorder %s25, 0
      %p46 = por %p44, %p45
      %p47 = scmp.ne.s32.totalorder %s33, %s34
      %p48 = scmp.eq.s32.totalorder %s26, 1
      %p49 = por %p47, %p48
      %p51 = scmp.ne.s32.totalorder %s34, %s50
      %p52 = scmp.eq.s32.totalorder %s26, 0
      %p53 = por %p51, %p52
      %s55 = sadd.s32 %s54, 1
      %p58 = scmp.eq.s32.totalorder %s20, 1
      %p59 = scmp.ne.s32.totalorder %s54, %s56
      %p60 = scmp.eq.s32.totalorder %s20, 0
      %p61 = por %p59, %p60
      %p62 = scmp.ne.s32.totalorder %s54, %s56
      %p63 = scmp.eq.s32.totalorder %s25, 1
      %p64 = por %p62, %p63
      %p65 = scmp.ne.s32.totalorder %s56, %s57
      %p66 = scmp.eq.s32.totalorder %s25, 0
      %p67 = por %p65, %p66
      %p68 = scmp.ne.s32.totalorder %s56, %s57
      %p69 = scmp.eq.s32.totalorder %s26, 1
      %p70 = por %p68, %p69
      %p72 = scmp.ne.s32.totalorder %s57, %s71
      %p73 = scmp.eq.s32.totalorder %s26, 0
      %p74 = por %p72, %p73
      %s76 = sadd.s32 %s75, 1
      %p79 = scmp.eq.s32.totalorder %s20, 1
      %p80 = scmp.ne.s32.totalorder %s75, %s77
      %p81 = scmp.eq.s32.totalorder %s20, 0
      %p82 = por %p80, %p81
      %p83 = scmp.ne.s32.totalorder %s75, %s77
      %p84 = scmp.eq.s32.totalorder %s25, 1
      %p85 = por %p83, %p84
      %p86 = scmp.ne.s32.totalorder %s77, %s78
      %p87 = scmp.eq.s32.totalorder %s25, 0
      %p88 = por %p86, %p87
      %p89 = scmp.ne.s32.totalorder %s77, %s78
      %p90 = scmp.eq.s32.totalorder %s26, 1
      %p91 = por %p89, %p90
      %p93 = scmp.ne.s32.totalorder %s78, %s92
      %p94 = scmp.eq.s32.totalorder %s26, 0
      %p95 = por %p93, %p94
      %s97 = sadd.s32 %s96, 1
      %p100 = scmp.eq.s32.totalorder %s20, 1
      %p101 = scmp.ne.s32.totalorder %s96, %s98
      %p102 = scmp.eq.s32.totalorder %s20, 0
      %p103 = por %p101, %p102
      %p104 = scmp.ne.s32.totalorder %s96, %s98
      %p105 = scmp.eq.s32.totalorder %s25, 1
      %p106 = por %p104, %p105
      %p107 = scmp.ne.s32.totalorder %s98, %s99
      %p108 = scmp.eq.s32.totalorder %s25, 0
      %p109 = por %p107, %p108
      %p110 = scmp.ne.s32.totalorder %s98, %s99
      %p111 = scmp.eq.s32.totalorder %s26, 1
      %p112 = por %p110, %p111
      %p114 = scmp.ne.s32.totalorder %s99, %s113
      %p115 = scmp.eq.s32.totalorder %s26, 0
      %p116 = por %p114, %p115
      %s118 = sadd.s32 %s117, 1
      %p121 = scmp.eq.s32.totalorder %s20, 1
      %p122 = scmp.ne.s32.totalorder %s117, %s119
      %p123 = scmp.eq.s32.totalorder %s20, 0
      %p124 = por %p122, %p123
      %p125 = scmp.ne.s32.totalorder %s117, %s119
      %p126 = scmp.eq.s32.totalorder %s25, 1
      %p127 = por %p125, %p126
      %p128 = scmp.ne.s32.totalorder %s119, %s120
      %p129 = scmp.eq.s32.totalorder %s25, 0
      %p130 = por %p128, %p129
      %p131 = scmp.ne.s32.totalorder %s119, %s120
      %p132 = scmp.eq.s32.totalorder %s26, 1
      %p133 = por %p131, %p132
      %p135 = scmp.ne.s32.totalorder %s120, %s134
      %p136 = scmp.eq.s32.totalorder %s26, 0
      %p137 = por %p135, %p136
      %s139 = sadd.s32 %s138, 1
      %p142 = scmp.eq.s32.totalorder %s20, 1
      %p143 = scmp.ne.s32.totalorder %s138, %s140
      %p144 = scmp.eq.s32.totalorder %s20, 0
      %p145 = por %p143, %p144
      %p146 = scmp.ne.s32.totalorder %s138, %s140
      %p147 = scmp.eq.s32.totalorder %s25, 1
      %p148 = por %p146, %p147
      %p149 = scmp.ne.s32.totalorder %s140, %s141
      %p150 = scmp.eq.s32.totalorder %s25, 0
      %p151 = por %p149, %p150
      %p152 = scmp.ne.s32.totalorder %s140, %s141
      %p153 = scmp.eq.s32.totalorder %s26, 1
      %p154 = por %p152, %p153
      %p156 = scmp.ne.s32.totalorder %s141, %s155
      %p157 = scmp.eq.s32.totalorder %s26, 0
      %p158 = por %p156, %p157
      %s159 = ssub.s32 %s20, %s27
      %p160 = scmp.eq.s32.totalorder %s159, 0
      %s162 = sadd.s32 %s161, 1
      %s163 = scalar_select %p160, %s161, %s162
      %p166 = pneg %p160
      %p167 = scmp.eq.s32.totalorder %s20, 1
      %p168 = por %p166, %p167
      %p169 = scmp.ne.s32.totalorder %s161, %s164
      %p170 = scmp.eq.s32.totalorder %s20, 0
      %p171 = por %p169, %p170
      %p172 = scmp.ne.s32.totalorder %s161, %s164
      %p173 = scmp.eq.s32.totalorder %s25, 1
      %p174 = por %p172, %p173
      %p175 = scmp.ne.s32.totalorder %s164, %s165
      %p176 = scmp.eq.s32.totalorder %s25, 0
      %p177 = por %p175, %p176
      %p178 = scmp.ne.s32.totalorder %s164, %s165
      %p179 = scmp.eq.s32.totalorder %s26, 1
      %p180 = por %p178, %p179
      %p182 = scmp.ne.s32.totalorder %s165, %s181
      %p183 = scmp.eq.s32.totalorder %s26, 0
      %p184 = por %p182, %p183
      %s185 = ssub.s32 %s20, %s27
      %p186 = scmp.eq.s32.totalorder %s185, 0
      %s188 = sadd.s32 %s187, 1
      %s189 = scalar_select %p186, %s187, %s188
      %p192 = pneg %p186
      %p193 = scmp.eq.s32.totalorder %s20, 1
      %p194 = por %p192, %p193
      %p195 = scmp.ne.s32.totalorder %s187, %s190
      %p196 = scmp.eq.s32.totalorder %s20, 0
      %p197 = por %p195, %p196
      %p198 = scmp.ne.s32.totalorder %s187, %s190
      %p199 = scmp.eq.s32.totalorder %s25, 1
      %p200 = por %p198, %p199
      %p201 = scmp.ne.s32.totalorder %s190, %s191
      %p202 = scmp.eq.s32.totalorder %s25, 0
      %p203 = por %p201, %p202
      %p204 = scmp.ne.s32.totalorder %s190, %s191
      %p205 = scmp.eq.s32.totalorder %s26, 1
      %p206 = por %p204, %p205
      %p208 = scmp.ne.s32.totalorder %s191, %s207
      %p209 = scmp.eq.s32.totalorder %s26, 0
      %p210 = por %p208, %p209
      %p211 = scmp.le.s32.totalorder 1, %s20
      %p212 = scmp.lt.s32.totalorder %s20, 3
      %p213 = pnand %p211, %p212
      %p214 = pneg %p213
      // Predicated region
      $region9: #{tpu_custom_call.1} parent=5 // pred_check
        _
      $region10: #{tpu_custom_call.1} parent=5 // pred_check_branch
        %216 = sbr.rel (%p213) target = $region12
      $region11: #{tpu_custom_call.1} parent=5 // pred_region
        %s217 = ssub.s32 %s20, 1
        // Predicated region
        $region13: #{tpu_custom_call.1} parent=11 // pred_check
          %p218 = pneg %p67
        $region14: #{tpu_custom_call.1} parent=11 // pred_check_branch
          %220 = sbr.rel (%p218) target = $region16
        $region15: #{tpu_custom_call.1} parent=11 // pred_region
          _
        $region16: #{tpu_custom_call.1} parent=11 // pred_fallthru
          _
        // Predicated region
        $region17: #{tpu_custom_call.1} parent=11 // pred_check
          %p221 = pneg %p88
        $region18: #{tpu_custom_call.1} parent=11 // pred_check_branch
          %223 = sbr.rel (%p221) target = $region20
        $region19: #{tpu_custom_call.1} parent=11 // pred_region
          _
        $region20: #{tpu_custom_call.1} parent=11 // pred_fallthru
          _
        // Predicated region
        $region21: #{tpu_custom_call.1} parent=11 // pred_check
          %p224 = pneg %p109
        $region22: #{tpu_custom_call.1} parent=11 // pred_check_branch
          %226 = sbr.rel (%p224) target = $region24
        $region23: #{tpu_custom_call.1} parent=11 // pred_region
          _
        $region24: #{tpu_custom_call.1} parent=11 // pred_fallthru
          _
        // Predicated region
        $region25: #{tpu_custom_call.1} parent=11 // pred_check
          %p227 = pneg %p130
        $region26: #{tpu_custom_call.1} parent=11 // pred_check_branch
          %229 = sbr.rel (%p227) target = $region28
        $region27: #{tpu_custom_call.1} parent=11 // pred_region
          _
        $region28: #{tpu_custom_call.1} parent=11 // pred_fallthru
          _
        // Predicated region
        $region29: #{tpu_custom_call.1} parent=11 // pred_check
          %p230 = pneg %p151
        $region30: #{tpu_custom_call.1} parent=11 // pred_check_branch
          %232 = sbr.rel (%p230) target = $region32
        $region31: #{tpu_custom_call.1} parent=11 // pred_region
          _
        $region32: #{tpu_custom_call.1} parent=11 // pred_fallthru
          _
      $region12: #{tpu_custom_call.1} parent=5 // pred_fallthru
        _
      %p233 = scmp.lt.s32.totalorder %s20, 2
      // Predicated region
      $region33: #{tpu_custom_call.1} parent=5 // pred_check
        %p234 = pneg %p233
      $region34: #{tpu_custom_call.1} parent=5 // pred_check_branch
        %236 = sbr.rel (%p234) target = $region36
      $region35: #{tpu_custom_call.1} parent=5 // pred_region
        // Predicated region
        $region37: #{tpu_custom_call.1} parent=35 // pred_check
          %p237 = pneg %p40
        $region38: #{tpu_custom_call.1} parent=35 // pred_check_branch
          %239 = sbr.rel (%p237) target = $region40
        $region39: #{tpu_custom_call.1} parent=35 // pred_region
          %p240 = scmp.lt.s32.totalorder %s20, 1
          %s241 = scalar_select %p240, %s20, 1
          %s242 = smul.addr %s241, 4
          %s243 = scalar_lea.vmem %s0, %s242
        $region40: #{tpu_custom_call.1} parent=35 // pred_fallthru
          _
      $region36: #{tpu_custom_call.1} parent=5 // pred_fallthru
        _
      %p244 = scmp.le.s32.totalorder 1, %s20
      %p245 = scmp.lt.s32.totalorder %s20, 3
      %p246 = pnand %p244, %p245
      %p247 = pneg %p246
      // Predicated region
      $region41: #{tpu_custom_call.1} parent=5 // pred_check
        _
      $region42: #{tpu_custom_call.1} parent=5 // pred_check_branch
        %249 = sbr.rel (%p246) target = $region44
      $region43: #{tpu_custom_call.1} parent=5 // pred_region
        %s250 = ssub.s32 %s20, 1
        %p251 = scmp.lt.s32.totalorder %s25, 1
        %s252 = scalar_select %p251, %s25, 1
        %s253 = smul.addr %s252, 4
        %s254 = scalar_lea.vmem %s0, %s253
        %p255 = pneg %p46
        %p256 = pneg %p43
        %p257 = pneg %p67
        %p258 = pneg %p64
        %p259 = pneg %p88
        %p260 = pneg %p85
        %p261 = pneg %p109
        %p262 = pneg %p106
        %p263 = pneg %p130
        %p264 = pneg %p127
        %p265 = pneg %p151
        %p266 = pneg %p148
        %p267 = pneg %p177
        %p268 = pneg %p174
        %s269 = sand.u32 %s164, 1
        %s270 = scalar_lea.sflag [#allocation3], %s269
        %s271 = sand.u32 %s164, 1
        %s272 = smul.addr %s271, 12
        %s273 = scalar_lea.vmem [#allocation2], %s272
        %p274 = pneg %p203
        %p275 = pneg %p200
        %s276 = sand.u32 %s190, 1
        %s277 = scalar_lea.sflag [#allocation5], %s276
        %s278 = sand.u32 %s190, 1
        %s279 = smul.addr %s278, 4
        %s280 = scalar_lea.vmem [#allocation4], %s279
        %p281 = scmp.lt.s32.totalorder %s25, 1
        %s282 = scalar_select %p281, %s25, 1
        %s283 = smul.addr %s282, 4
        %s284 = scalar_lea.vmem %s0, %s283
        %v285 = vld [vmem:[%s284] sm:$0xf]
        %v286 = vld [vmem:[%s1] sm:$0xff]
        %v287 = vld [vmem:[%s1 + $0x8] sm:$0xff]
        %v288 = vld [vmem:[%s1 + $0x10] sm:$0xff]
        %v289 = vld [vmem:[%s1 + $0x18] sm:$0xff]
        %v290 = vld [vmem:[%s1 + $0x20] sm:$0xff]
        %v291 = vld [vmem:[%s1 + $0x28] sm:$0xff]
        %v292 = vld [vmem:[%s1 + $0x30] sm:$0xff]
        %v293 = vld [vmem:[%s1 + $0x38] sm:$0xff]
        %v294 = vld [vmem:[%s1 + $0x40] sm:$0xff]
        %v295 = vld [vmem:[%s1 + $0x48] sm:$0xff]
        %v296 = vld [vmem:[%s1 + $0x50] sm:$0xff]
        %v297 = vld [vmem:[%s1 + $0x58] sm:$0xff]
        %v298 = vld [vmem:[%s1 + $0x60] sm:$0xff]
        %v299 = vld [vmem:[%s1 + $0x68] sm:$0xff]
        %v300 = vld [vmem:[%s1 + $0x70] sm:$0xff]
        %v301 = vld [vmem:[%s1 + $0x78] sm:$0xff]
        %v302 = vld [vmem:[%s2] sm:$0xff]
        %v303 = vld [vmem:[%s2 + $0x8] sm:$0xff]
        %v304 = vld [vmem:[%s2 + $0x10] sm:$0xff]
        %v305 = vld [vmem:[%s2 + $0x18] sm:$0xff]
        %v306 = vld [vmem:[%s4] sm:$0xff]
        %v307 = vld [vmem:[%s4 + $0x8] sm:$0xff]
        %v308 = vld [vmem:[%s4 + $0x10] sm:$0xff]
        %v309 = vld [vmem:[%s4 + $0x18] sm:$0xff]
        %v310 = vld [vmem:[%s4 + $0x20] sm:$0xff]
        %v311 = vld [vmem:[%s4 + $0x28] sm:$0xff]
        %v312 = vld [vmem:[%s4 + $0x30] sm:$0xff]
        %v313 = vld [vmem:[%s4 + $0x38] sm:$0xff]
        %v314 = vld [vmem:[%s4 + $0x40] sm:$0xff]
        %v315 = vld [vmem:[%s4 + $0x48] sm:$0xff]
        %v316 = vld [vmem:[%s4 + $0x50] sm:$0xff]
        %v317 = vld [vmem:[%s4 + $0x58] sm:$0xff]
        %v318 = vld [vmem:[%s4 + $0x60] sm:$0xff]
        %v319 = vld [vmem:[%s4 + $0x68] sm:$0xff]
        %v320 = vld [vmem:[%s4 + $0x70] sm:$0xff]
        %v321 = vld [vmem:[%s4 + $0x78] sm:$0xff]
        %v322 = vld [vmem:[%s3] sm:$0x1]
        %v324 = vlaneseq
        %v325 = vshrl.u32 %v324, 7
        %v326 = vsub.s32 0, %v325
        %v327 = vrot.slane %v322, %v326
        %v329 = vld [vmem:[%s5] sm:$0x1]
        %v331 = vlaneseq
        %v332 = vshrl.u32 %v331, 7
        %v333 = vsub.s32 0, %v332
        %v334 = vrot.slane %v329, %v333
        %336 = vmatprep.subr.mxu0 0.0
        %337 = vmatpush1.msra.mxu0 %v321
        %338 = vmatprep.subr.mxu0 0.0
        %339 = vmatpush1.msra.mxu0 %v320
        %340 = vmatprep.subr.mxu0 0.0
        %341 = vmatpush1.msra.mxu0 %v319
        %342 = vmatprep.subr.mxu0 0.0
        %343 = vmatpush1.msra.mxu0 %v318
        %344 = vmatprep.subr.mxu0 0.0
        %345 = vmatpush1.msra.mxu0 %v317
        %346 = vmatprep.subr.mxu0 0.0
        %347 = vmatpush1.msra.mxu0 %v316
        %348 = vmatprep.subr.mxu0 0.0
        %349 = vmatpush1.msra.mxu0 %v315
        %350 = vmatprep.subr.mxu0 0.0
        %351 = vmatpush1.msra.mxu0 %v314
        %352 = vmatprep.subr.mxu0 0.0
        %353 = vmatpush1.msra.mxu0 %v313
        %354 = vmatprep.subr.mxu0 0.0
        %355 = vmatpush1.msra.mxu0 %v312
        %356 = vmatprep.subr.mxu0 0.0
        %357 = vmatpush1.msra.mxu0 %v311
        %358 = vmatprep.subr.mxu0 0.0
        %359 = vmatpush1.msra.mxu0 %v310
        %360 = vmatprep.subr.mxu0 0.0
        %361 = vmatpush1.msra.mxu0 %v309
        %362 = vmatprep.subr.mxu0 0.0
        %363 = vmatpush1.msra.mxu0 %v308
        %364 = vmatprep.subr.mxu0 0.0
        %365 = vmatpush1.msra.mxu0 %v307
        %366 = vmatprep.subr.mxu0 0.0
        %367 = vmatpush1.msra.mxu0 %v306
        %368 = vmatprep.subr.mxu0 0.0
        %369 = vmatpush2.msra.mxu0 0.0
        %370 = vmatprep.subr.mxu0 0.0
        %371 = vmatpush2.msra.mxu0 0.0
        %372 = vmatprep.subr.mxu0 0.0
        %373 = vmatpush2.msra.mxu0 0.0
        %374 = vmatprep.subr.mxu0 0.0
        %375 = vmatpush2.msra.mxu0 0.0
        %376 = vmatprep.subr.mxu0 0.0
        %377 = vmatpush2.msra.mxu0 0.0
        %378 = vmatprep.subr.mxu0 0.0
        %379 = vmatpush2.msra.mxu0 0.0
        %380 = vmatprep.subr.mxu0 0.0
        %381 = vmatpush2.msra.mxu0 0.0
        %382 = vmatprep.subr.mxu0 0.0
        %383 = vmatpush2.msra.mxu0 0.0
        %384 = vmatprep.subr.mxu0 0.0
        %385 = vmatpush2.msra.mxu0 0.0
        %386 = vmatprep.subr.mxu0 0.0
        %387 = vmatpush2.msra.mxu0 0.0
        %388 = vmatprep.subr.mxu0 0.0
        %389 = vmatpush2.msra.mxu0 0.0
        %390 = vmatprep.subr.mxu0 0.0
        %391 = vmatpush2.msra.mxu0 0.0
        %392 = vmatprep.subr.mxu0 0.0
        %393 = vmatpush2.msra.mxu0 0.0
        %394 = vmatprep.subr.mxu0 0.0
        %395 = vmatpush2.msra.mxu0 0.0
        %396 = vmatprep.subr.mxu0 0.0
        %397 = vmatpush2.msra.mxu0 0.0
        %398 = vmatprep.subr.mxu0 0.0
        %399 = vmatpush2.msra.mxu0 0.0
        %400 = vmatprep.mubr.f32.mxu0 0.0
        %401 = vmatmul.mubr.f32.gmra.mxu0 %v285
        %v402 = vpop.f32.mrf.mxu0
        %v403 = vadd.f32 %v334, %v402
        %v404 = vpop.f32.mrf.mxu0
        %405 = vdwg.mxu0
        %407 = vrot.lane.b32.xlu0 %v403, 112
        %v408 = vpop.permute.xlu0 %407
        %vm409 = vcmask 130048
        %v410 = vsel %vm409, %v403, 0
        %v412 = vsel %vm409, %v408, 0
        %414 = vmatprep.subr.mxu0 0.0
        %415 = vmatpush1.xpose.msra.mxu0 0.0
        %416 = vmatprep.subr.mxu0 0.0
        %417 = vmatpush1.xpose.msra.mxu0 0.0
        %418 = vmatprep.subr.mxu0 0.0
        %419 = vmatpush1.xpose.msra.mxu0 0.0
        %420 = vmatprep.subr.mxu0 0.0
        %421 = vmatpush1.xpose.msra.mxu0 0.0
        %422 = vmatprep.subr.mxu0 0.0
        %423 = vmatpush1.xpose.msra.mxu0 0.0
        %424 = vmatprep.subr.mxu0 0.0
        %425 = vmatpush1.xpose.msra.mxu0 0.0
        %426 = vmatprep.subr.mxu0 0.0
        %427 = vmatpush1.xpose.msra.mxu0 0.0
        %428 = vmatprep.subr.mxu0 0.0
        %429 = vmatpush1.xpose.msra.mxu0 0.0
        %430 = vmatprep.subr.mxu0 0.0
        %431 = vmatpush1.xpose.msra.mxu0 0.0
        %432 = vmatprep.subr.mxu0 0.0
        %433 = vmatpush1.xpose.msra.mxu0 0.0
        %434 = vmatprep.subr.mxu0 0.0
        %435 = vmatpush1.xpose.msra.mxu0 0.0
        %436 = vmatprep.subr.mxu0 0.0
        %437 = vmatpush1.xpose.msra.mxu0 0.0
        %438 = vmatprep.subr.mxu0 0.0
        %439 = vmatpush1.xpose.msra.mxu0 0.0
        %440 = vmatprep.subr.mxu0 0.0
        %441 = vmatpush1.xpose.msra.mxu0 0.0
        %442 = vmatprep.subr.mxu0 0.0
        %443 = vmatpush1.xpose.msra.mxu0 0.0
        %444 = vmatprep.subr.mxu0 0.0
        %445 = vmatpush1.xpose.msra.mxu0 %v412
        %446 = vmatprep.subr.mxu0 0.0
        %447 = vmatpush2.xpose.msra.mxu0 0.0
        %448 = vmatprep.subr.mxu0 0.0
        %449 = vmatpush2.xpose.msra.mxu0 0.0
        %450 = vmatprep.subr.mxu0 0.0
        %451 = vmatpush2.xpose.msra.mxu0 0.0
        %452 = vmatprep.subr.mxu0 0.0
        %453 = vmatpush2.xpose.msra.mxu0 0.0
        %454 = vmatprep.subr.mxu0 0.0
        %455 = vmatpush2.xpose.msra.mxu0 0.0
        %456 = vmatprep.subr.mxu0 0.0
        %457 = vmatpush2.xpose.msra.mxu0 0.0
        %458 = vmatprep.subr.mxu0 0.0
        %459 = vmatpush2.xpose.msra.mxu0 0.0
        %460 = vmatprep.subr.mxu0 0.0
        %461 = vmatpush2.xpose.msra.mxu0 0.0
        %462 = vmatprep.subr.mxu0 0.0
        %463 = vmatpush2.xpose.msra.mxu0 0.0
        %464 = vmatprep.subr.mxu0 0.0
        %465 = vmatpush2.xpose.msra.mxu0 0.0
        %466 = vmatprep.subr.mxu0 0.0
        %467 = vmatpush2.xpose.msra.mxu0 0.0
        %468 = vmatprep.subr.mxu0 0.0
        %469 = vmatpush2.xpose.msra.mxu0 0.0
        %470 = vmatprep.subr.mxu0 0.0
        %471 = vmatpush2.xpose.msra.mxu0 0.0
        %472 = vmatprep.subr.mxu0 0.0
        %473 = vmatpush2.xpose.msra.mxu0 0.0
        %474 = vmatprep.subr.mxu0 0.0
        %475 = vmatpush2.xpose.msra.mxu0 0.0
        %476 = vmatprep.subr.mxu0 0.0
        %477 = vmatpush2.xpose.msra.mxu0 0.0
        %478 = vmatprep.mubr.f32.mxu0 0.0
        %479 = vmatmul.mubr.f32.gmra.mxu0 %v410
        %v480 = vpop.f32.mrf.mxu0
        %v481 = vadd.f32 0.0, %v480
        %v482 = vpop.f32.mrf.mxu0
        %483 = vdwg.mxu0
        %v484 = vmul.f32 %v481, 0.17677669
        %vm485 = vcmask 27648
        %v486 = vsel %vm485, %v484, -inf
        %487 = vmax.xlane.f32.xlu0 %v486
        %v488 = vpop.xlane.xlu0 %487
        %v489 = vsub.f32 %v484, %v488
        %v490 = vmul.f32 %v489, 1.442695
        %v491 = vpow.pop %v490
        %v492 = vsel %vm485, %v491, 0.0
        %493 = vadd.xlane.f32.xlu0 %v492
        %v494 = vpop.xlane.xlu0 %493
        %v495 = vrcp.pop %v494
        %v496 = vmul.f32 %v491, %v495
        %497 = vrot.lane.b32.xlu0 %v403, 96
        %v498 = vpop.permute.xlu0 %497
        %vm499 = vcmask 31744
        %v501 = vsel %vm499, %v496, 0
        %vm503 = vcmask 1043456
        %v504 = vsel %vm503, %v498, 0
        %506 = vmatprep.subr.mxu0 0.0
        %507 = vmatpush1.msra.mxu0 0.0
        %508 = vmatprep.subr.mxu0 0.0
        %509 = vmatpush1.msra.mxu0 0.0
        %510 = vmatprep.subr.mxu0 0.0
        %511 = vmatpush1.msra.mxu0 0.0
        %512 = vmatprep.subr.mxu0 0.0
        %513 = vmatpush1.msra.mxu0 0.0
        %514 = vmatprep.subr.mxu0 0.0
        %515 = vmatpush1.msra.mxu0 0.0
        %516 = vmatprep.subr.mxu0 0.0
        %517 = vmatpush1.msra.mxu0 0.0
        %518 = vmatprep.subr.mxu0 0.0
        %519 = vmatpush1.msra.mxu0 0.0
        %520 = vmatprep.subr.mxu0 0.0
        %521 = vmatpush1.msra.mxu0 0.0
        %522 = vmatprep.subr.mxu0 0.0
        %523 = vmatpush1.msra.mxu0 0.0
        %524 = vmatprep.subr.mxu0 0.0
        %525 = vmatpush1.msra.mxu0 0.0
        %526 = vmatprep.subr.mxu0 0.0
        %527 = vmatpush1.msra.mxu0 0.0
        %528 = vmatprep.subr.mxu0 0.0
        %529 = vmatpush1.msra.mxu0 0.0
        %530 = vmatprep.subr.mxu0 0.0
        %531 = vmatpush1.msra.mxu0 0.0
        %532 = vmatprep.subr.mxu0 0.0
        %533 = vmatpush1.msra.mxu0 0.0
        %534 = vmatprep.subr.mxu0 0.0
        %535 = vmatpush1.msra.mxu0 0.0
        %536 = vmatprep.subr.mxu0 0.0
        %537 = vmatpush1.msra.mxu0 %v504
        %538 = vmatprep.subr.mxu0 0.0
        %539 = vmatpush2.msra.mxu0 0.0
        %540 = vmatprep.subr.mxu0 0.0
        %541 = vmatpush2.msra.mxu0 0.0
        %542 = vmatprep.subr.mxu0 0.0
        %543 = vmatpush2.msra.mxu0 0.0
        %544 = vmatprep.subr.mxu0 0.0
        %545 = vmatpush2.msra.mxu0 0.0
        %546 = vmatprep.subr.mxu0 0.0
        %547 = vmatpush2.msra.mxu0 0.0
        %548 = vmatprep.subr.mxu0 0.0
        %549 = vmatpush2.msra.mxu0 0.0
        %550 = vmatprep.subr.mxu0 0.0
        %551 = vmatpush2.msra.mxu0 0.0
        %552 = vmatprep.subr.mxu0 0.0
        %553 = vmatpush2.msra.mxu0 0.0
        %554 = vmatprep.subr.mxu0 0.0
        %555 = vmatpush2.msra.mxu0 0.0
        %556 = vmatprep.subr.mxu0 0.0
        %557 = vmatpush2.msra.mxu0 0.0
        %558 = vmatprep.subr.mxu0 0.0
        %559 = vmatpush2.msra.mxu0 0.0
        %560 = vmatprep.subr.mxu0 0.0
        %561 = vmatpush2.msra.mxu0 0.0
        %562 = vmatprep.subr.mxu0 0.0
        %563 = vmatpush2.msra.mxu0 0.0
        %564 = vmatprep.subr.mxu0 0.0
        %565 = vmatpush2.msra.mxu0 0.0
        %566 = vmatprep.subr.mxu0 0.0
        %567 = vmatpush2.msra.mxu0 0.0
        %568 = vmatprep.subr.mxu0 0.0
        %569 = vmatpush2.msra.mxu0 0.0
        %570 = vmatprep.mubr.f32.mxu0 0.0
        %571 = vmatmul.mubr.f32.gmra.mxu0 %v501
        %v572 = vpop.f32.mrf.mxu0
        %v573 = vadd.f32 0.0, %v572
        %v574 = vpop.f32.mrf.mxu0
        %575 = vdwg.mxu0
        %576 = vst.msk [vmem:[%s273] sm:$0xf] %vm485, %v496
        %vm577 = vcmask 261120
        %v579 = vsel %vm577, %v573, 0
        %581 = vmatprep.subr.mxu0 0.0
        %582 = vmatpush1.msra.mxu0 0.0
        %583 = vmatprep.subr.mxu0 0.0
        %584 = vmatpush1.msra.mxu0 0.0
        %585 = vmatprep.subr.mxu0 0.0
        %586 = vmatpush1.msra.mxu0 0.0
        %587 = vmatprep.subr.mxu0 0.0
        %588 = vmatpush1.msra.mxu0 0.0
        %589 = vmatprep.subr.mxu0 0.0
        %590 = vmatpush1.msra.mxu0 0.0
        %591 = vmatprep.subr.mxu0 0.0
        %592 = vmatpush1.msra.mxu0 0.0
        %593 = vmatprep.subr.mxu0 0.0
        %594 = vmatpush1.msra.mxu0 0.0
        %595 = vmatprep.subr.mxu0 0.0
        %596 = vmatpush1.msra.mxu0 0.0
        %597 = vmatprep.subr.mxu0 0.0
        %598 = vmatpush1.msra.mxu0 0.0
        %599 = vmatprep.subr.mxu0 0.0
        %600 = vmatpush1.msra.mxu0 0.0
        %601 = vmatprep.subr.mxu0 0.0
        %602 = vmatpush1.msra.mxu0 0.0
        %603 = vmatprep.subr.mxu0 0.0
        %604 = vmatpush1.msra.mxu0 0.0
        %605 = vmatprep.subr.mxu0 0.0
        %606 = vmatpush1.msra.mxu0 %v305
        %607 = vmatprep.subr.mxu0 0.0
        %608 = vmatpush1.msra.mxu0 %v304
        %609 = vmatprep.subr.mxu0 0.0
        %610 = vmatpush1.msra.mxu0 %v303
        %611 = vmatprep.subr.mxu0 0.0
        %612 = vmatpush1.msra.mxu0 %v302
        %613 = vmatprep.subr.mxu0 0.0
        %614 = vmatpush2.msra.mxu0 0.0
        %615 = vmatprep.subr.mxu0 0.0
        %616 = vmatpush2.msra.mxu0 0.0
        %617 = vmatprep.subr.mxu0 0.0
        %618 = vmatpush2.msra.mxu0 0.0
        %619 = vmatprep.subr.mxu0 0.0
        %620 = vmatpush2.msra.mxu0 0.0
        %621 = vmatprep.subr.mxu0 0.0
        %622 = vmatpush2.msra.mxu0 0.0
        %623 = vmatprep.subr.mxu0 0.0
        %624 = vmatpush2.msra.mxu0 0.0
        %625 = vmatprep.subr.mxu0 0.0
        %626 = vmatpush2.msra.mxu0 0.0
        %627 = vmatprep.subr.mxu0 0.0
        %628 = vmatpush2.msra.mxu0 0.0
        %629 = vmatprep.subr.mxu0 0.0
        %630 = vmatpush2.msra.mxu0 0.0
        %631 = vmatprep.subr.mxu0 0.0
        %632 = vmatpush2.msra.mxu0 0.0
        %633 = vmatprep.subr.mxu0 0.0
        %634 = vmatpush2.msra.mxu0 0.0
        %635 = vmatprep.subr.mxu0 0.0
        %636 = vmatpush2.msra.mxu0 0.0
        %637 = vmatprep.subr.mxu0 0.0
        %638 = vmatpush2.msra.mxu0 0.0
        %639 = vmatprep.subr.mxu0 0.0
        %640 = vmatpush2.msra.mxu0 0.0
        %641 = vmatprep.subr.mxu0 0.0
        %642 = vmatpush2.msra.mxu0 0.0
        %643 = vmatprep.subr.mxu0 0.0
        %644 = vmatpush2.msra.mxu0 0.0
        %645 = vmatprep.mubr.f32.mxu0 0.0
        %646 = vmatmul.mubr.f32.gmra.mxu0 %v579
        %v647 = vpop.f32.mrf.mxu0
        %v648 = vadd.f32 0.0, %v647
        %v649 = vpop.f32.mrf.mxu0
        %650 = vdwg.mxu0
        %651 = vmatprep.subr.mxu0 0.0
        %652 = vmatpush1.msra.mxu0 %v301
        %653 = vmatprep.subr.mxu0 0.0
        %654 = vmatpush1.msra.mxu0 %v300
        %655 = vmatprep.subr.mxu0 0.0
        %656 = vmatpush1.msra.mxu0 %v299
        %657 = vmatprep.subr.mxu0 0.0
        %658 = vmatpush1.msra.mxu0 %v298
        %659 = vmatprep.subr.mxu0 0.0
        %660 = vmatpush1.msra.mxu0 %v297
        %661 = vmatprep.subr.mxu0 0.0
        %662 = vmatpush1.msra.mxu0 %v296
        %663 = vmatprep.subr.mxu0 0.0
        %664 = vmatpush1.msra.mxu0 %v295
        %665 = vmatprep.subr.mxu0 0.0
        %666 = vmatpush1.msra.mxu0 %v294
        %667 = vmatprep.subr.mxu0 0.0
        %668 = vmatpush1.msra.mxu0 %v293
        %669 = vmatprep.subr.mxu0 0.0
        %670 = vmatpush1.msra.mxu0 %v292
        %671 = vmatprep.subr.mxu0 0.0
        %672 = vmatpush1.msra.mxu0 %v291
        %673 = vmatprep.subr.mxu0 0.0
        %674 = vmatpush1.msra.mxu0 %v290
        %675 = vmatprep.subr.mxu0 0.0
        %676 = vmatpush1.msra.mxu0 %v289
        %677 = vmatprep.subr.mxu0 0.0
        %678 = vmatpush1.msra.mxu0 %v288
        %679 = vmatprep.subr.mxu0 0.0
        %680 = vmatpush1.msra.mxu0 %v287
        %681 = vmatprep.subr.mxu0 0.0
        %682 = vmatpush1.msra.mxu0 %v286
        %683 = vmatprep.subr.mxu0 0.0
        %684 = vmatpush2.msra.mxu0 0.0
        %685 = vmatprep.subr.mxu0 0.0
        %686 = vmatpush2.msra.mxu0 0.0
        %687 = vmatprep.subr.mxu0 0.0
        %688 = vmatpush2.msra.mxu0 0.0
        %689 = vmatprep.subr.mxu0 0.0
        %690 = vmatpush2.msra.mxu0 0.0
        %691 = vmatprep.subr.mxu0 0.0
        %692 = vmatpush2.msra.mxu0 0.0
        %693 = vmatprep.subr.mxu0 0.0
        %694 = vmatpush2.msra.mxu0 0.0
        %695 = vmatprep.subr.mxu0 0.0
        %696 = vmatpush2.msra.mxu0 0.0
        %697 = vmatprep.subr.mxu0 0.0
        %698 = vmatpush2.msra.mxu0 0.0
        %699 = vmatprep.subr.mxu0 0.0
        %700 = vmatpush2.msra.mxu0 0.0
        %701 = vmatprep.subr.mxu0 0.0
        %702 = vmatpush2.msra.mxu0 0.0
        %703 = vmatprep.subr.mxu0 0.0
        %704 = vmatpush2.msra.mxu0 0.0
        %705 = vmatprep.subr.mxu0 0.0
        %706 = vmatpush2.msra.mxu0 0.0
        %707 = vmatprep.subr.mxu0 0.0
        %708 = vmatpush2.msra.mxu0 0.0
        %709 = vmatprep.subr.mxu0 0.0
        %710 = vmatpush2.msra.mxu0 0.0
        %711 = vmatprep.subr.mxu0 0.0
        %712 = vmatpush2.msra.mxu0 0.0
        %713 = vmatprep.subr.mxu0 0.0
        %714 = vmatpush2.msra.mxu0 0.0
        %715 = vmatprep.mubr.f32.mxu0 0.0
        %716 = vmatmul.mubr.f32.gmra.mxu0 %v285
        %v717 = vpop.f32.mrf.mxu0
        %v718 = vadd.f32 %v648, %v717
        %v719 = vpop.f32.mrf.mxu0
        %720 = vdwg.mxu0
        %v721 = vadd.f32 %v718, %v327
        %v722 = vtanh.pop %v721
        %723 = vmatprep.subr.mxu0 0.0
        %724 = vmatpush1.msra.mxu0 %v321
        %725 = vmatprep.subr.mxu0 0.0
        %726 = vmatpush1.msra.mxu0 %v320
        %727 = vmatprep.subr.mxu0 0.0
        %728 = vmatpush1.msra.mxu0 %v319
        %729 = vmatprep.subr.mxu0 0.0
        %730 = vmatpush1.msra.mxu0 %v318
        %731 = vmatprep.subr.mxu0 0.0
        %732 = vmatpush1.msra.mxu0 %v317
        %733 = vmatprep.subr.mxu0 0.0
        %734 = vmatpush1.msra.mxu0 %v316
        %735 = vmatprep.subr.mxu0 0.0
        %736 = vmatpush1.msra.mxu0 %v315
        %737 = vmatprep.subr.mxu0 0.0
        %738 = vmatpush1.msra.mxu0 %v314
        %739 = vmatprep.subr.mxu0 0.0
        %740 = vmatpush1.msra.mxu0 %v313
        %741 = vmatprep.subr.mxu0 0.0
        %742 = vmatpush1.msra.mxu0 %v312
        %743 = vmatprep.subr.mxu0 0.0
        %744 = vmatpush1.msra.mxu0 %v311
        %745 = vmatprep.subr.mxu0 0.0
        %746 = vmatpush1.msra.mxu0 %v310
        %747 = vmatprep.subr.mxu0 0.0
        %748 = vmatpush1.msra.mxu0 %v309
        %749 = vmatprep.subr.mxu0 0.0
        %750 = vmatpush1.msra.mxu0 %v308
        %751 = vmatprep.subr.mxu0 0.0
        %752 = vmatpush1.msra.mxu0 %v307
        %753 = vmatprep.subr.mxu0 0.0
        %754 = vmatpush1.msra.mxu0 %v306
        %755 = vmatprep.subr.mxu0 0.0
        %756 = vmatpush2.msra.mxu0 0.0
        %757 = vmatprep.subr.mxu0 0.0
        %758 = vmatpush2.msra.mxu0 0.0
        %759 = vmatprep.subr.mxu0 0.0
        %760 = vmatpush2.msra.mxu0 0.0
        %761 = vmatprep.subr.mxu0 0.0
        %762 = vmatpush2.msra.mxu0 0.0
        %763 = vmatprep.subr.mxu0 0.0
        %764 = vmatpush2.msra.mxu0 0.0
        %765 = vmatprep.subr.mxu0 0.0
        %766 = vmatpush2.msra.mxu0 0.0
        %767 = vmatprep.subr.mxu0 0.0
        %768 = vmatpush2.msra.mxu0 0.0
        %769 = vmatprep.subr.mxu0 0.0
        %770 = vmatpush2.msra.mxu0 0.0
        %771 = vmatprep.subr.mxu0 0.0
        %772 = vmatpush2.msra.mxu0 0.0
        %773 = vmatprep.subr.mxu0 0.0
        %774 = vmatpush2.msra.mxu0 0.0
        %775 = vmatprep.subr.mxu0 0.0
        %776 = vmatpush2.msra.mxu0 0.0
        %777 = vmatprep.subr.mxu0 0.0
        %778 = vmatpush2.msra.mxu0 0.0
        %779 = vmatprep.subr.mxu0 0.0
        %780 = vmatpush2.msra.mxu0 0.0
        %781 = vmatprep.subr.mxu0 0.0
        %782 = vmatpush2.msra.mxu0 0.0
        %783 = vmatprep.subr.mxu0 0.0
        %784 = vmatpush2.msra.mxu0 0.0
        %785 = vmatprep.subr.mxu0 0.0
        %786 = vmatpush2.msra.mxu0 0.0
        %787 = vmatprep.mubr.f32.mxu0 0.0
        %788 = vmatmul.mubr.f32.gmra.mxu0 %v722
        %v789 = vpop.f32.mrf.mxu0
        %v790 = vadd.f32 %v334, %v789
        %v791 = vpop.f32.mrf.mxu0
        %792 = vdwg.mxu0
        %794 = vrot.lane.b32.xlu0 %v790, 112
        %v795 = vpop.permute.xlu0 %794
        %v796 = vsel %vm409, %v790, 0
        %v798 = vsel %vm409, %v795, 0
        %800 = vmatprep.subr.mxu0 0.0
        %801 = vmatpush1.xpose.msra.mxu0 0.0
        %802 = vmatprep.subr.mxu0 0.0
        %803 = vmatpush1.xpose.msra.mxu0 0.0
        %804 = vmatprep.subr.mxu0 0.0
        %805 = vmatpush1.xpose.msra.mxu0 0.0
        %806 = vmatprep.subr.mxu0 0.0
        %807 = vmatpush1.xpose.msra.mxu0 0.0
        %808 = vmatprep.subr.mxu0 0.0
        %809 = vmatpush1.xpose.msra.mxu0 0.0
        %810 = vmatprep.subr.mxu0 0.0
        %811 = vmatpush1.xpose.msra.mxu0 0.0
        %812 = vmatprep.subr.mxu0 0.0
        %813 = vmatpush1.xpose.msra.mxu0 0.0
        %814 = vmatprep.subr.mxu0 0.0
        %815 = vmatpush1.xpose.msra.mxu0 0.0
        %816 = vmatprep.subr.mxu0 0.0
        %817 = vmatpush1.xpose.msra.mxu0 0.0
        %818 = vmatprep.subr.mxu0 0.0
        %819 = vmatpush1.xpose.msra.mxu0 0.0
        %820 = vmatprep.subr.mxu0 0.0
        %821 = vmatpush1.xpose.msra.mxu0 0.0
        %822 = vmatprep.subr.mxu0 0.0
        %823 = vmatpush1.xpose.msra.mxu0 0.0
        %824 = vmatprep.subr.mxu0 0.0
        %825 = vmatpush1.xpose.msra.mxu0 0.0
        %826 = vmatprep.subr.mxu0 0.0
        %827 = vmatpush1.xpose.msra.mxu0 0.0
        %828 = vmatprep.subr.mxu0 0.0
        %829 = vmatpush1.xpose.msra.mxu0 0.0
        %830 = vmatprep.subr.mxu0 0.0
        %831 = vmatpush1.xpose.msra.mxu0 %v798
        %832 = vmatprep.subr.mxu0 0.0
        %833 = vmatpush2.xpose.msra.mxu0 0.0
        %834 = vmatprep.subr.mxu0 0.0
        %835 = vmatpush2.xpose.msra.mxu0 0.0
        %836 = vmatprep.subr.mxu0 0.0
        %837 = vmatpush2.xpose.msra.mxu0 0.0
        %838 = vmatprep.subr.mxu0 0.0
        %839 = vmatpush2.xpose.msra.mxu0 0.0
        %840 = vmatprep.subr.mxu0 0.0
        %841 = vmatpush2.xpose.msra.mxu0 0.0
        %842 = vmatprep.subr.mxu0 0.0
        %843 = vmatpush2.xpose.msra.mxu0 0.0
        %844 = vmatprep.subr.mxu0 0.0
        %845 = vmatpush2.xpose.msra.mxu0 0.0
        %846 = vmatprep.subr.mxu0 0.0
        %847 = vmatpush2.xpose.msra.mxu0 0.0
        %848 = vmatprep.subr.mxu0 0.0
        %849 = vmatpush2.xpose.msra.mxu0 0.0
        %850 = vmatprep.subr.mxu0 0.0
        %851 = vmatpush2.xpose.msra.mxu0 0.0
        %852 = vmatprep.subr.mxu0 0.0
        %853 = vmatpush2.xpose.msra.mxu0 0.0
        %854 = vmatprep.subr.mxu0 0.0
        %855 = vmatpush2.xpose.msra.mxu0 0.0
        %856 = vmatprep.subr.mxu0 0.0
        %857 = vmatpush2.xpose.msra.mxu0 0.0
        %858 = vmatprep.subr.mxu0 0.0
        %859 = vmatpush2.xpose.msra.mxu0 0.0
        %860 = vmatprep.subr.mxu0 0.0
        %861 = vmatpush2.xpose.msra.mxu0 0.0
        %862 = vmatprep.subr.mxu0 0.0
        %863 = vmatpush2.xpose.msra.mxu0 0.0
        %864 = vmatprep.mubr.f32.mxu0 0.0
        %865 = vmatmul.mubr.f32.gmra.mxu0 %v796
        %v866 = vpop.f32.mrf.mxu0
        %v867 = vadd.f32 0.0, %v866
        %v868 = vpop.f32.mrf.mxu0
        %869 = vdwg.mxu0
        %v870 = vmul.f32 %v867, 0.17677669
        %v871 = vsel %vm485, %v870, -inf
        %872 = vmax.xlane.f32.xlu0 %v871
        %v873 = vpop.xlane.xlu0 %872
        %v874 = vsub.f32 %v870, %v873
        %v875 = vmul.f32 %v874, 1.442695
        %v876 = vpow.pop %v875
        %v877 = vsel %vm485, %v876, 0.0
        %878 = vadd.xlane.f32.xlu0 %v877
        %v879 = vpop.xlane.xlu0 %878
        %v880 = vrcp.pop %v879
        %v881 = vmul.f32 %v876, %v880
        %882 = vrot.lane.b32.xlu0 %v790, 96
        %v883 = vpop.permute.xlu0 %882
        %v885 = vsel %vm499, %v881, 0
        %v887 = vsel %vm503, %v883, 0
        %889 = vmatprep.subr.mxu0 0.0
        %890 = vmatpush1.msra.mxu0 0.0
        %891 = vmatprep.subr.mxu0 0.0
        %892 = vmatpush1.msra.mxu0 0.0
        %893 = vmatprep.subr.mxu0 0.0
        %894 = vmatpush1.msra.mxu0 0.0
        %895 = vmatprep.subr.mxu0 0.0
        %896 = vmatpush1.msra.mxu0 0.0
        %897 = vmatprep.subr.mxu0 0.0
        %898 = vmatpush1.msra.mxu0 0.0
        %899 = vmatprep.subr.mxu0 0.0
        %900 = vmatpush1.msra.mxu0 0.0
        %901 = vmatprep.subr.mxu0 0.0
        %902 = vmatpush1.msra.mxu0 0.0
        %903 = vmatprep.subr.mxu0 0.0
        %904 = vmatpush1.msra.mxu0 0.0
        %905 = vmatprep.subr.mxu0 0.0
        %906 = vmatpush1.msra.mxu0 0.0
        %907 = vmatprep.subr.mxu0 0.0
        %908 = vmatpush1.msra.mxu0 0.0
        %909 = vmatprep.subr.mxu0 0.0
        %910 = vmatpush1.msra.mxu0 0.0
        %911 = vmatprep.subr.mxu0 0.0
        %912 = vmatpush1.msra.mxu0 0.0
        %913 = vmatprep.subr.mxu0 0.0
        %914 = vmatpush1.msra.mxu0 0.0
        %915 = vmatprep.subr.mxu0 0.0
        %916 = vmatpush1.msra.mxu0 0.0
        %917 = vmatprep.subr.mxu0 0.0
        %918 = vmatpush1.msra.mxu0 0.0
        %919 = vmatprep.subr.mxu0 0.0
        %920 = vmatpush1.msra.mxu0 %v887
        %921 = vmatprep.subr.mxu0 0.0
        %922 = vmatpush2.msra.mxu0 0.0
        %923 = vmatprep.subr.mxu0 0.0
        %924 = vmatpush2.msra.mxu0 0.0
        %925 = vmatprep.subr.mxu0 0.0
        %926 = vmatpush2.msra.mxu0 0.0
        %927 = vmatprep.subr.mxu0 0.0
        %928 = vmatpush2.msra.mxu0 0.0
        %929 = vmatprep.subr.mxu0 0.0
        %930 = vmatpush2.msra.mxu0 0.0
        %931 = vmatprep.subr.mxu0 0.0
        %932 = vmatpush2.msra.mxu0 0.0
        %933 = vmatprep.subr.mxu0 0.0
        %934 = vmatpush2.msra.mxu0 0.0
        %935 = vmatprep.subr.mxu0 0.0
        %936 = vmatpush2.msra.mxu0 0.0
        %937 = vmatprep.subr.mxu0 0.0
        %938 = vmatpush2.msra.mxu0 0.0
        %939 = vmatprep.subr.mxu0 0.0
        %940 = vmatpush2.msra.mxu0 0.0
        %941 = vmatprep.subr.mxu0 0.0
        %942 = vmatpush2.msra.mxu0 0.0
        %943 = vmatprep.subr.mxu0 0.0
        %944 = vmatpush2.msra.mxu0 0.0
        %945 = vmatprep.subr.mxu0 0.0
        %946 = vmatpush2.msra.mxu0 0.0
        %947 = vmatprep.subr.mxu0 0.0
        %948 = vmatpush2.msra.mxu0 0.0
        %949 = vmatprep.subr.mxu0 0.0
        %950 = vmatpush2.msra.mxu0 0.0
        %951 = vmatprep.subr.mxu0 0.0
        %952 = vmatpush2.msra.mxu0 0.0
        %953 = vmatprep.mubr.f32.mxu0 0.0
        %954 = vmatmul.mubr.f32.gmra.mxu0 %v885
        %v955 = vpop.f32.mrf.mxu0
        %v956 = vadd.f32 0.0, %v955
        %v957 = vpop.f32.mrf.mxu0
        %958 = vdwg.mxu0
        %s959 = scalar_lea.vmem %s273, 4 [#allocation2]
        %960 = vst.msk [vmem:[%s959] sm:$0xf] %vm485, %v881
        %v962 = vsel %vm577, %v956, 0
        %964 = vmatprep.subr.mxu0 0.0
        %965 = vmatpush1.msra.mxu0 0.0
        %966 = vmatprep.subr.mxu0 0.0
        %967 = vmatpush1.msra.mxu0 0.0
        %968 = vmatprep.subr.mxu0 0.0
        %969 = vmatpush1.msra.mxu0 0.0
        %970 = vmatprep.subr.mxu0 0.0
        %971 = vmatpush1.msra.mxu0 0.0
        %972 = vmatprep.subr.mxu0 0.0
        %973 = vmatpush1.msra.mxu0 0.0
        %974 = vmatprep.subr.mxu0 0.0
        %975 = vmatpush1.msra.mxu0 0.0
        %976 = vmatprep.subr.mxu0 0.0
        %977 = vmatpush1.msra.mxu0 0.0
        %978 = vmatprep.subr.mxu0 0.0
        %979 = vmatpush1.msra.mxu0 0.0
        %980 = vmatprep.subr.mxu0 0.0
        %981 = vmatpush1.msra.mxu0 0.0
        %982 = vmatprep.subr.mxu0 0.0
        %983 = vmatpush1.msra.mxu0 0.0
        %984 = vmatprep.subr.mxu0 0.0
        %985 = vmatpush1.msra.mxu0 0.0
        %986 = vmatprep.subr.mxu0 0.0
        %987 = vmatpush1.msra.mxu0 0.0
        %988 = vmatprep.subr.mxu0 0.0
        %989 = vmatpush1.msra.mxu0 %v305
        %990 = vmatprep.subr.mxu0 0.0
        %991 = vmatpush1.msra.mxu0 %v304
        %992 = vmatprep.subr.mxu0 0.0
        %993 = vmatpush1.msra.mxu0 %v303
        %994 = vmatprep.subr.mxu0 0.0
        %995 = vmatpush1.msra.mxu0 %v302
        %996 = vmatprep.subr.mxu0 0.0
        %997 = vmatpush2.msra.mxu0 0.0
        %998 = vmatprep.subr.mxu0 0.0
        %999 = vmatpush2.msra.mxu0 0.0
        %1000 = vmatprep.subr.mxu0 0.0
        %1001 = vmatpush2.msra.mxu0 0.0
        %1002 = vmatprep.subr.mxu0 0.0
        %1003 = vmatpush2.msra.mxu0 0.0
        %1004 = vmatprep.subr.mxu0 0.0
        %1005 = vmatpush2.msra.mxu0 0.0
        %1006 = vmatprep.subr.mxu0 0.0
        %1007 = vmatpush2.msra.mxu0 0.0
        %1008 = vmatprep.subr.mxu0 0.0
        %1009 = vmatpush2.msra.mxu0 0.0
        %1010 = vmatprep.subr.mxu0 0.0
        %1011 = vmatpush2.msra.mxu0 0.0
        %1012 = vmatprep.subr.mxu0 0.0
        %1013 = vmatpush2.msra.mxu0 0.0
        %1014 = vmatprep.subr.mxu0 0.0
        %1015 = vmatpush2.msra.mxu0 0.0
        %1016 = vmatprep.subr.mxu0 0.0
        %1017 = vmatpush2.msra.mxu0 0.0
        %1018 = vmatprep.subr.mxu0 0.0
        %1019 = vmatpush2.msra.mxu0 0.0
        %1020 = vmatprep.subr.mxu0 0.0
        %1021 = vmatpush2.msra.mxu0 0.0
        %1022 = vmatprep.subr.mxu0 0.0
        %1023 = vmatpush2.msra.mxu0 0.0
        %1024 = vmatprep.subr.mxu0 0.0
        %1025 = vmatpush2.msra.mxu0 0.0
        %1026 = vmatprep.subr.mxu0 0.0
        %1027 = vmatpush2.msra.mxu0 0.0
        %1028 = vmatprep.mubr.f32.mxu0 0.0
        %1029 = vmatmul.mubr.f32.gmra.mxu0 %v962
        %v1030 = vpop.f32.mrf.mxu0
        %v1031 = vadd.f32 0.0, %v1030
        %v1032 = vpop.f32.mrf.mxu0
        %1033 = vdwg.mxu0
        %1034 = vmatprep.subr.mxu0 0.0
        %1035 = vmatpush1.msra.mxu0 %v301
        %1036 = vmatprep.subr.mxu0 0.0
        %1037 = vmatpush1.msra.mxu0 %v300
        %1038 = vmatprep.subr.mxu0 0.0
        %1039 = vmatpush1.msra.mxu0 %v299
        %1040 = vmatprep.subr.mxu0 0.0
        %1041 = vmatpush1.msra.mxu0 %v298
        %1042 = vmatprep.subr.mxu0 0.0
        %1043 = vmatpush1.msra.mxu0 %v297
        %1044 = vmatprep.subr.mxu0 0.0
        %1045 = vmatpush1.msra.mxu0 %v296
        %1046 = vmatprep.subr.mxu0 0.0
        %1047 = vmatpush1.msra.mxu0 %v295
        %1048 = vmatprep.subr.mxu0 0.0
        %1049 = vmatpush1.msra.mxu0 %v294
        %1050 = vmatprep.subr.mxu0 0.0
        %1051 = vmatpush1.msra.mxu0 %v293
        %1052 = vmatprep.subr.mxu0 0.0
        %1053 = vmatpush1.msra.mxu0 %v292
        %1054 = vmatprep.subr.mxu0 0.0
        %1055 = vmatpush1.msra.mxu0 %v291
        %1056 = vmatprep.subr.mxu0 0.0
        %1057 = vmatpush1.msra.mxu0 %v290
        %1058 = vmatprep.subr.mxu0 0.0
        %1059 = vmatpush1.msra.mxu0 %v289
        %1060 = vmatprep.subr.mxu0 0.0
        %1061 = vmatpush1.msra.mxu0 %v288
        %1062 = vmatprep.subr.mxu0 0.0
        %1063 = vmatpush1.msra.mxu0 %v287
        %1064 = vmatprep.subr.mxu0 0.0
        %1065 = vmatpush1.msra.mxu0 %v286
        %1066 = vmatprep.subr.mxu0 0.0
        %1067 = vmatpush2.msra.mxu0 0.0
        %1068 = vmatprep.subr.mxu0 0.0
        %1069 = vmatpush2.msra.mxu0 0.0
        %1070 = vmatprep.subr.mxu0 0.0
        %1071 = vmatpush2.msra.mxu0 0.0
        %1072 = vmatprep.subr.mxu0 0.0
        %1073 = vmatpush2.msra.mxu0 0.0
        %1074 = vmatprep.subr.mxu0 0.0
        %1075 = vmatpush2.msra.mxu0 0.0
        %1076 = vmatprep.subr.mxu0 0.0
        %1077 = vmatpush2.msra.mxu0 0.0
        %1078 = vmatprep.subr.mxu0 0.0
        %1079 = vmatpush2.msra.mxu0 0.0
        %1080 = vmatprep.subr.mxu0 0.0
        %1081 = vmatpush2.msra.mxu0 0.0
        %1082 = vmatprep.subr.mxu0 0.0
        %1083 = vmatpush2.msra.mxu0 0.0
        %1084 = vmatprep.subr.mxu0 0.0
        %1085 = vmatpush2.msra.mxu0 0.0
        %1086 = vmatprep.subr.mxu0 0.0
        %1087 = vmatpush2.msra.mxu0 0.0
        %1088 = vmatprep.subr.mxu0 0.0
        %1089 = vmatpush2.msra.mxu0 0.0
        %1090 = vmatprep.subr.mxu0 0.0
        %1091 = vmatpush2.msra.mxu0 0.0
        %1092 = vmatprep.subr.mxu0 0.0
        %1093 = vmatpush2.msra.mxu0 0.0
        %1094 = vmatprep.subr.mxu0 0.0
        %1095 = vmatpush2.msra.mxu0 0.0
        %1096 = vmatprep.subr.mxu0 0.0
        %1097 = vmatpush2.msra.mxu0 0.0
        %1098 = vmatprep.mubr.f32.mxu0 0.0
        %1099 = vmatmul.mubr.f32.gmra.mxu0 %v722
        %v1100 = vpop.f32.mrf.mxu0
        %v1101 = vadd.f32 %v1031, %v1100
        %v1102 = vpop.f32.mrf.mxu0
        %1103 = vdwg.mxu0
        %v1104 = vadd.f32 %v1101, %v327
        %v1105 = vtanh.pop %v1104
        %1106 = vmatprep.subr.mxu0 0.0
        %1107 = vmatpush1.msra.mxu0 %v321
        %1108 = vmatprep.subr.mxu0 0.0
        %1109 = vmatpush1.msra.mxu0 %v320
        %1110 = vmatprep.subr.mxu0 0.0
        %1111 = vmatpush1.msra.mxu0 %v319
        %1112 = vmatprep.subr.mxu0 0.0
        %1113 = vmatpush1.msra.mxu0 %v318
        %1114 = vmatprep.subr.mxu0 0.0
        %1115 = vmatpush1.msra.mxu0 %v317
        %1116 = vmatprep.subr.mxu0 0.0
        %1117 = vmatpush1.msra.mxu0 %v316
        %1118 = vmatprep.subr.mxu0 0.0
        %1119 = vmatpush1.msra.mxu0 %v315
        %1120 = vmatprep.subr.mxu0 0.0
        %1121 = vmatpush1.msra.mxu0 %v314
        %1122 = vmatprep.subr.mxu0 0.0
        %1123 = vmatpush1.msra.mxu0 %v313
        %1124 = vmatprep.subr.mxu0 0.0
        %1125 = vmatpush1.msra.mxu0 %v312
        %1126 = vmatprep.subr.mxu0 0.0
        %1127 = vmatpush1.msra.mxu0 %v311
        %1128 = vmatprep.subr.mxu0 0.0
        %1129 = vmatpush1.msra.mxu0 %v310
        %1130 = vmatprep.subr.mxu0 0.0
        %1131 = vmatpush1.msra.mxu0 %v309
        %1132 = vmatprep.subr.mxu0 0.0
        %1133 = vmatpush1.msra.mxu0 %v308
        %1134 = vmatprep.subr.mxu0 0.0
        %1135 = vmatpush1.msra.mxu0 %v307
        %1136 = vmatprep.subr.mxu0 0.0
        %1137 = vmatpush1.msra.mxu0 %v306
        %1138 = vmatprep.subr.mxu0 0.0
        %1139 = vmatpush2.msra.mxu0 0.0
        %1140 = vmatprep.subr.mxu0 0.0
        %1141 = vmatpush2.msra.mxu0 0.0
        %1142 = vmatprep.subr.mxu0 0.0
        %1143 = vmatpush2.msra.mxu0 0.0
        %1144 = vmatprep.subr.mxu0 0.0
        %1145 = vmatpush2.msra.mxu0 0.0
        %1146 = vmatprep.subr.mxu0 0.0
        %1147 = vmatpush2.msra.mxu0 0.0
        %1148 = vmatprep.subr.mxu0 0.0
        %1149 = vmatpush2.msra.mxu0 0.0
        %1150 = vmatprep.subr.mxu0 0.0
        %1151 = vmatpush2.msra.mxu0 0.0
        %1152 = vmatprep.subr.mxu0 0.0
        %1153 = vmatpush2.msra.mxu0 0.0
        %1154 = vmatprep.subr.mxu0 0.0
        %1155 = vmatpush2.msra.mxu0 0.0
        %1156 = vmatprep.subr.mxu0 0.0
        %1157 = vmatpush2.msra.mxu0 0.0
        %1158 = vmatprep.subr.mxu0 0.0
        %1159 = vmatpush2.msra.mxu0 0.0
        %1160 = vmatprep.subr.mxu0 0.0
        %1161 = vmatpush2.msra.mxu0 0.0
        %1162 = vmatprep.subr.mxu0 0.0
        %1163 = vmatpush2.msra.mxu0 0.0
        %1164 = vmatprep.subr.mxu0 0.0
        %1165 = vmatpush2.msra.mxu0 0.0
        %1166 = vmatprep.subr.mxu0 0.0
        %1167 = vmatpush2.msra.mxu0 0.0
        %1168 = vmatprep.subr.mxu0 0.0
        %1169 = vmatpush2.msra.mxu0 0.0
        %1170 = vmatprep.mubr.f32.mxu0 0.0
        %1171 = vmatmul.mubr.f32.gmra.mxu0 %v1105
        %v1172 = vpop.f32.mrf.mxu0
        %v1173 = vadd.f32 %v334, %v1172
        %v1174 = vpop.f32.mrf.mxu0
        %1175 = vdwg.mxu0
        %1177 = vrot.lane.b32.xlu0 %v1173, 112
        %v1178 = vpop.permute.xlu0 %1177
        %v1179 = vsel %vm409, %v1173, 0
        %v1181 = vsel %vm409, %v1178, 0
        %1183 = vmatprep.subr.mxu0 0.0
        %1184 = vmatpush1.xpose.msra.mxu0 0.0
        %1185 = vmatprep.subr.mxu0 0.0
        %1186 = vmatpush1.xpose.msra.mxu0 0.0
        %1187 = vmatprep.subr.mxu0 0.0
        %1188 = vmatpush1.xpose.msra.mxu0 0.0
        %1189 = vmatprep.subr.mxu0 0.0
        %1190 = vmatpush1.xpose.msra.mxu0 0.0
        %1191 = vmatprep.subr.mxu0 0.0
        %1192 = vmatpush1.xpose.msra.mxu0 0.0
        %1193 = vmatprep.subr.mxu0 0.0
        %1194 = vmatpush1.xpose.msra.mxu0 0.0
        %1195 = vmatprep.subr.mxu0 0.0
        %1196 = vmatpush1.xpose.msra.mxu0 0.0
        %1197 = vmatprep.subr.mxu0 0.0
        %1198 = vmatpush1.xpose.msra.mxu0 0.0
        %1199 = vmatprep.subr.mxu0 0.0
        %1200 = vmatpush1.xpose.msra.mxu0 0.0
        %1201 = vmatprep.subr.mxu0 0.0
        %1202 = vmatpush1.xpose.msra.mxu0 0.0
        %1203 = vmatprep.subr.mxu0 0.0
        %1204 = vmatpush1.xpose.msra.mxu0 0.0
        %1205 = vmatprep.subr.mxu0 0.0
        %1206 = vmatpush1.xpose.msra.mxu0 0.0
        %1207 = vmatprep.subr.mxu0 0.0
        %1208 = vmatpush1.xpose.msra.mxu0 0.0
        %1209 = vmatprep.subr.mxu0 0.0
        %1210 = vmatpush1.xpose.msra.mxu0 0.0
        %1211 = vmatprep.subr.mxu0 0.0
        %1212 = vmatpush1.xpose.msra.mxu0 0.0
        %1213 = vmatprep.subr.mxu0 0.0
        %1214 = vmatpush1.xpose.msra.mxu0 %v1181
        %1215 = vmatprep.subr.mxu0 0.0
        %1216 = vmatpush2.xpose.msra.mxu0 0.0
        %1217 = vmatprep.subr.mxu0 0.0
        %1218 = vmatpush2.xpose.msra.mxu0 0.0
        %1219 = vmatprep.subr.mxu0 0.0
        %1220 = vmatpush2.xpose.msra.mxu0 0.0
        %1221 = vmatprep.subr.mxu0 0.0
        %1222 = vmatpush2.xpose.msra.mxu0 0.0
        %1223 = vmatprep.subr.mxu0 0.0
        %1224 = vmatpush2.xpose.msra.mxu0 0.0
        %1225 = vmatprep.subr.mxu0 0.0
        %1226 = vmatpush2.xpose.msra.mxu0 0.0
        %1227 = vmatprep.subr.mxu0 0.0
        %1228 = vmatpush2.xpose.msra.mxu0 0.0
        %1229 = vmatprep.subr.mxu0 0.0
        %1230 = vmatpush2.xpose.msra.mxu0 0.0
        %1231 = vmatprep.subr.mxu0 0.0
        %1232 = vmatpush2.xpose.msra.mxu0 0.0
        %1233 = vmatprep.subr.mxu0 0.0
        %1234 = vmatpush2.xpose.msra.mxu0 0.0
        %1235 = vmatprep.subr.mxu0 0.0
        %1236 = vmatpush2.xpose.msra.mxu0 0.0
        %1237 = vmatprep.subr.mxu0 0.0
        %1238 = vmatpush2.xpose.msra.mxu0 0.0
        %1239 = vmatprep.subr.mxu0 0.0
        %1240 = vmatpush2.xpose.msra.mxu0 0.0
        %1241 = vmatprep.subr.mxu0 0.0
        %1242 = vmatpush2.xpose.msra.mxu0 0.0
        %1243 = vmatprep.subr.mxu0 0.0
        %1244 = vmatpush2.xpose.msra.mxu0 0.0
        %1245 = vmatprep.subr.mxu0 0.0
        %1246 = vmatpush2.xpose.msra.mxu0 0.0
        %1247 = vmatprep.mubr.f32.mxu0 0.0
        %1248 = vmatmul.mubr.f32.gmra.mxu0 %v1179
        %v1249 = vpop.f32.mrf.mxu0
        %v1250 = vadd.f32 0.0, %v1249
        %v1251 = vpop.f32.mrf.mxu0
        %1252 = vdwg.mxu0
        %v1253 = vmul.f32 %v1250, 0.17677669
        %v1254 = vsel %vm485, %v1253, -inf
        %1255 = vmax.xlane.f32.xlu0 %v1254
        %v1256 = vpop.xlane.xlu0 %1255
        %v1257 = vsub.f32 %v1253, %v1256
        %v1258 = vmul.f32 %v1257, 1.442695
        %v1259 = vpow.pop %v1258
        %v1260 = vsel %vm485, %v1259, 0.0
        %1261 = vadd.xlane.f32.xlu0 %v1260
        %v1262 = vpop.xlane.xlu0 %1261
        %v1263 = vrcp.pop %v1262
        %v1264 = vmul.f32 %v1259, %v1263
        %1265 = vrot.lane.b32.xlu0 %v1173, 96
        %v1266 = vpop.permute.xlu0 %1265
        %v1268 = vsel %vm499, %v1264, 0
        %v1270 = vsel %vm503, %v1266, 0
        %1272 = vmatprep.subr.mxu0 0.0
        %1273 = vmatpush1.msra.mxu0 0.0
        %1274 = vmatprep.subr.mxu0 0.0
        %1275 = vmatpush1.msra.mxu0 0.0
        %1276 = vmatprep.subr.mxu0 0.0
        %1277 = vmatpush1.msra.mxu0 0.0
        %1278 = vmatprep.subr.mxu0 0.0
        %1279 = vmatpush1.msra.mxu0 0.0
        %1280 = vmatprep.subr.mxu0 0.0
        %1281 = vmatpush1.msra.mxu0 0.0
        %1282 = vmatprep.subr.mxu0 0.0
        %1283 = vmatpush1.msra.mxu0 0.0
        %1284 = vmatprep.subr.mxu0 0.0
        %1285 = vmatpush1.msra.mxu0 0.0
        %1286 = vmatprep.subr.mxu0 0.0
        %1287 = vmatpush1.msra.mxu0 0.0
        %1288 = vmatprep.subr.mxu0 0.0
        %1289 = vmatpush1.msra.mxu0 0.0
        %1290 = vmatprep.subr.mxu0 0.0
        %1291 = vmatpush1.msra.mxu0 0.0
        %1292 = vmatprep.subr.mxu0 0.0
        %1293 = vmatpush1.msra.mxu0 0.0
        %1294 = vmatprep.subr.mxu0 0.0
        %1295 = vmatpush1.msra.mxu0 0.0
        %1296 = vmatprep.subr.mxu0 0.0
        %1297 = vmatpush1.msra.mxu0 0.0
        %1298 = vmatprep.subr.mxu0 0.0
        %1299 = vmatpush1.msra.mxu0 0.0
        %1300 = vmatprep.subr.mxu0 0.0
        %1301 = vmatpush1.msra.mxu0 0.0
        %1302 = vmatprep.subr.mxu0 0.0
        %1303 = vmatpush1.msra.mxu0 %v1270
        %1304 = vmatprep.subr.mxu0 0.0
        %1305 = vmatpush2.msra.mxu0 0.0
        %1306 = vmatprep.subr.mxu0 0.0
        %1307 = vmatpush2.msra.mxu0 0.0
        %1308 = vmatprep.subr.mxu0 0.0
        %1309 = vmatpush2.msra.mxu0 0.0
        %1310 = vmatprep.subr.mxu0 0.0
        %1311 = vmatpush2.msra.mxu0 0.0
        %1312 = vmatprep.subr.mxu0 0.0
        %1313 = vmatpush2.msra.mxu0 0.0
        %1314 = vmatprep.subr.mxu0 0.0
        %1315 = vmatpush2.msra.mxu0 0.0
        %1316 = vmatprep.subr.mxu0 0.0
        %1317 = vmatpush2.msra.mxu0 0.0
        %1318 = vmatprep.subr.mxu0 0.0
        %1319 = vmatpush2.msra.mxu0 0.0
        %1320 = vmatprep.subr.mxu0 0.0
        %1321 = vmatpush2.msra.mxu0 0.0
        %1322 = vmatprep.subr.mxu0 0.0
        %1323 = vmatpush2.msra.mxu0 0.0
        %1324 = vmatprep.subr.mxu0 0.0
        %1325 = vmatpush2.msra.mxu0 0.0
        %1326 = vmatprep.subr.mxu0 0.0
        %1327 = vmatpush2.msra.mxu0 0.0
        %1328 = vmatprep.subr.mxu0 0.0
        %1329 = vmatpush2.msra.mxu0 0.0
        %1330 = vmatprep.subr.mxu0 0.0
        %1331 = vmatpush2.msra.mxu0 0.0
        %1332 = vmatprep.subr.mxu0 0.0
        %1333 = vmatpush2.msra.mxu0 0.0
        %1334 = vmatprep.subr.mxu0 0.0
        %1335 = vmatpush2.msra.mxu0 0.0
        %1336 = vmatprep.mubr.f32.mxu0 0.0
        %1337 = vmatmul.mubr.f32.gmra.mxu0 %v1268
        %v1338 = vpop.f32.mrf.mxu0
        %v1339 = vadd.f32 0.0, %v1338
        %v1340 = vpop.f32.mrf.mxu0
        %1341 = vdwg.mxu0
        %s1342 = scalar_lea.vmem %s273, 8 [#allocation2]
        %1343 = vst.msk [vmem:[%s1342] sm:$0xf] %vm485, %v1264
        %vm1344 = vcmask 257024
        %1345 = vst.msk [vmem:[%s280] sm:$0xf] %vm1344, %v1339
        %s1346 = sand.u32 %s164, 1
        %s1347 = scalar_lea.sflag [#allocation3], %s1346
        %s1348 = sand.u32 %s164, 1
        %s1349 = smul.addr %s1348, 12
        %s1350 = scalar_lea.vmem [#allocation2], %s1349
        %s1351 = sand.u32 %s190, 1
        %s1352 = scalar_lea.sflag [#allocation5], %s1351
        %s1353 = sand.u32 %s190, 1
        %s1354 = smul.addr %s1353, 4
        %s1355 = scalar_lea.vmem [#allocation4], %s1354
        // Predicated region
        $region45: #{tpu_custom_call.1} parent=43 // pred_check
          %p1356 = pneg %p174
        $region46: #{tpu_custom_call.1} parent=43 // pred_check_branch
          %1358 = sbr.rel (%p1356) target = $region48
        $region47: #{tpu_custom_call.1} parent=43 // pred_region
          %s1360 = ssub.s32 192, 192
          %1361 = vsyncadd %s1347, %s1360
          %s1362 = smul.addr %s25, 64
          %s1363 = scalar_lea.hbm %s6, %s1362
          %s1364 = sshll.u32 %s1350, 4
          %s1365 = int_to_ptr.vmem [resolvable:$true] %s1364
          %1370 = dma.vmem_to_hbm [thread:$0]  %s1365, 192, %s1363, %s1347, 64, 128, 4
        $region48: #{tpu_custom_call.1} parent=43 // pred_fallthru
          _
        // Predicated region
        $region49: #{tpu_custom_call.1} parent=43 // pred_check
          %p1371 = pneg %p200
        $region50: #{tpu_custom_call.1} parent=43 // pred_check_branch
          %1373 = sbr.rel (%p1371) target = $region52
        $region51: #{tpu_custom_call.1} parent=43 // pred_region
          %s1375 = ssub.s32 64, 64
          %1376 = vsyncadd %s1352, %s1375
          %s1377 = smul.addr %s25, 64
          %s1378 = scalar_lea.hbm %s7, %s1377
          %s1380 = sshll.u32 %s1355, 4
          %s1381 = int_to_ptr.vmem [resolvable:$true] %s1380
          %1383 = dma.vmem_to_hbm [thread:$0]  %s1381, 64, %s1378, %s1352
        $region52: #{tpu_custom_call.1} parent=43 // pred_fallthru
          _
      $region44: #{tpu_custom_call.1} parent=5 // pred_fallthru
        _
      %p1384 = scmp.le.s32.totalorder 2, %s20
      // Predicated region
      $region53: #{tpu_custom_call.1} parent=5 // pred_check
        %p1385 = pneg %p1384
      $region54: #{tpu_custom_call.1} parent=5 // pred_check_branch
        %1387 = sbr.rel (%p1385) target = $region56
      $region55: #{tpu_custom_call.1} parent=5 // pred_region
        %s1388 = ssub.s32 %s20, 2
        // Predicated region
        $region57: #{tpu_custom_call.1} parent=55 // pred_check
          %p1389 = pneg %p180
        $region58: #{tpu_custom_call.1} parent=55 // pred_check_branch
          %1391 = sbr.rel (%p1389) target = $region60
        $region59: #{tpu_custom_call.1} parent=55 // pred_region
          %s1392 = sand.u32 %s165, 1
          %s1393 = scalar_lea.sflag [#allocation3], %s1392
          %s1394 = sand.u32 %s165, 1
          %s1395 = smul.addr %s1394, 12
          %s1396 = scalar_lea.vmem [#allocation2], %s1395
          %1397 = dma.done %s1393, 192
        $region60: #{tpu_custom_call.1} parent=55 // pred_fallthru
          _
        // Predicated region
        $region61: #{tpu_custom_call.1} parent=55 // pred_check
          %p1398 = pneg %p206
        $region62: #{tpu_custom_call.1} parent=55 // pred_check_branch
          %1400 = sbr.rel (%p1398) target = $region64
        $region63: #{tpu_custom_call.1} parent=55 // pred_region
          %s1401 = sand.u32 %s191, 1
          %s1402 = scalar_lea.sflag [#allocation5], %s1401
          %s1403 = sand.u32 %s191, 1
          %s1404 = smul.addr %s1403, 4
          %s1405 = scalar_lea.vmem [#allocation4], %s1404
          %1406 = dma.done %s1402, 64
        $region64: #{tpu_custom_call.1} parent=55 // pred_fallthru
          _
      $region56: #{tpu_custom_call.1} parent=5 // pred_fallthru
        _
    $region6: #{tpu_custom_call.1} parent=1 // loop_footer
      %s24 = sadd.s32 1, %s20
    $region7: #{tpu_custom_call.1} parent=1 // loop_footer_branch
      %19 = sbr.rel target = $region3
    $region8: #{tpu_custom_call.1} parent=1 // loop_exit
      _
    %1407 = vsyncpa [#allocation3], 1
    %s1408 = scalar_lea.sflag [#allocation3], 1
    %1409 = vsyncpa %s1408, 1
    %1410 = vsyncpa [#allocation5], 1
    %s1411 = scalar_lea.sflag [#allocation5], 1
    %1412 = vsyncpa %s1411, 1

</llo_original>
